<compile_context>
chip_gen: v6e
topology: v6e:2x2x1
jax: 0.10.0
libtpu: 0.0.40
codegen_flags: <defaults>
</compile_context>

<pallas_src>
import functools

import jax
import jax.numpy as jnp
from jax import lax
from jax.experimental import pallas as pl
from jax.experimental.pallas import tpu as pltpu  # noqa: F401  (TPU backend)


# ----------------------------------------------------------------------------
# Kernel 1: fused 4x (GCNConv + tanh) + channel concat  ->  [N, D_pad]
# ----------------------------------------------------------------------------
def dgcnn_gcn_stack_kernel(a_ref, x_ref,
                           w1_ref, b1_ref, w2_ref, b2_ref,
                           w3_ref, b3_ref, w4_ref, b4_ref, o_ref):
    """o = concat(x1, x2, x3, x4_padded) with xi = tanh(A_hat @ (x_{i-1} @ Wi) + bi).

    A_hat is loaded once (bf16) and reused for all four layers; activations
    never leave VMEM.  gcn4's weight/bias are zero-padded so the concatenated
    output is exactly a multiple of 128 lanes (pad columns are tanh(0) == 0),
    which keeps the single HBM store lane-dense.
    """
    a = a_ref[...]                                     # bf16 [N, N]

    def gcn_layer(h, w_ref, b_ref):
        xw = jnp.dot(h, w_ref[...], preferred_element_type=jnp.float32)
        agg = jnp.dot(a, xw.astype(jnp.bfloat16),
                      preferred_element_type=jnp.float32)
        return jnp.tanh(agg + b_ref[...])

    x1 = gcn_layer(x_ref[...], w1_ref, b1_ref)         # [N, H]
    x2 = gcn_layer(x1, w2_ref, b2_ref)                 # [N, H]
    x3 = gcn_layer(x2, w3_ref, b3_ref)                 # [N, H]
    x4 = gcn_layer(x3, w4_ref, b4_ref)                 # [N, pad4] (cols > 0 are 0)
    o_ref[...] = jnp.concatenate([x1, x2, x3, x4], axis=-1)


# ----------------------------------------------------------------------------
# Kernel 2: fused post-pooling head
#   conv1(+relu) -> MaxPool1d(2,2) -> conv2(+relu) -> flatten ->
#   classifier1(+relu) -> [dropout=id] -> classifier2 -> log_softmax
# ----------------------------------------------------------------------------
def dgcnn_head_kernel(xs_ref, w1_ref, b1_ref, w2_ref, b2_ref,
                      wc1_ref, bc1_ref, wc2_ref, bc2_ref, o_ref,
                      *, num_graphs, k):
    B = num_graphs
    L2 = k // 2
    c1 = w1_ref.shape[1]                 # conv1 out channels (16)
    k2 = w2_ref.shape[0] // c1           # conv2 kernel size (5)
    c2 = w2_ref.shape[1]                 # conv2 out channels (32)
    T = L2 - k2 + 1                      # conv2 output length

    # conv1: stride == kernel, so every pooled row is exactly one window.
    y1 = jnp.dot(xs_ref[...], w1_ref[...],
                 preferred_element_type=jnp.float32) + b1_ref[...]
    y1 = jnp.maximum(y1, 0.0)            # [B*k, c1]

    # MaxPool1d(2, 2): even/odd row selection via tiny 0/1 matmuls (robust
    # lowering, avoids strided slices / lane-splitting reshapes in-kernel).
    BK, BL = B * k, B * L2
    r = lax.broadcasted_iota(jnp.int32, (BL, BK), 0)
    c = lax.broadcasted_iota(jnp.int32, (BL, BK), 1)
    even_sel = (c == 2 * r).astype(jnp.float32)
    odd_sel = (c == 2 * r + 1).astype(jnp.float32)
    even = jnp.dot(even_sel, y1, preferred_element_type=jnp.float32)
    odd = jnp.dot(odd_sel, y1, preferred_element_type=jnp.float32)
    yp = jnp.maximum(even, odd)          # [B*L2, c1], row = g*L2 + pos

    # conv2 (kernel k2, stride 1) + relu, then torch channel-major flatten.
    w2 = w2_ref[...]
    rg = lax.broadcasted_iota(jnp.int32, (B, BL), 0)
    cg = lax.broadcasted_iota(jnp.int32, (B, BL), 1)
    feat = jnp.zeros((B, c2 * T), jnp.float32)
    for t in range(T):                   # static unroll (T == 1 for k == 10)
        acc = jnp.zeros((B, c2), jnp.float32) + b2_ref[...]
        for p in range(k2):
            sel = (cg == rg * L2 + (t + p)).astype(jnp.float32)     # [B, B*L2]
            rows = jnp.dot(sel, yp, preferred_element_type=jnp.float32)
            acc = acc + jnp.dot(rows, w2[p * c1:(p + 1) * c1, :],
                                preferred_element_type=jnp.float32)
        y2_t = jnp.maximum(acc, 0.0)                                 # [B, c2]
        if T == 1:
            feat = y2_t
        else:
            rp = lax.broadcasted_iota(jnp.int32, (c2, c2 * T), 0)
            cp = lax.broadcasted_iota(jnp.int32, (c2, c2 * T), 1)
            place = (cp == rp * T + t).astype(jnp.float32)           # [c2, c2*T]
            feat = feat + jnp.dot(y2_t, place,
                                  preferred_element_type=jnp.float32)

    # classifier1 + relu
    h = jnp.dot(feat, wc1_ref[...],
                preferred_element_type=jnp.float32) + bc1_ref[...]
    h = jnp.maximum(h, 0.0)
    # TODO(synk): dropout(p=0.5) implemented as identity (eval / inference mode).
    logits = jnp.dot(h, wc2_ref[...],
                     preferred_element_type=jnp.float32) + bc2_ref[...]
    m = jnp.max(logits, axis=-1, keepdims=True)
    z = logits - m
    lse = jnp.log(jnp.sum(jnp.exp(z), axis=-1, keepdims=True))
    o_ref[...] = z - lse


def _whole_array_call(kernel, out_shape, *arrays):
    """Run a kernel with whole-array blocks (no grid) — everything fits VMEM.

    TODO(synk): for large graphs (N beyond a few thousand nodes), tile A_hat
    rows with a grid, mark the row axis "parallel" (v7x dual-TC) and set
    pltpu.CompilerParams(vmem_limit_bytes=...); unnecessary at these sizes.
    """
    return pl.pallas_call(
        kernel,
        out_shape=jax.ShapeDtypeStruct(out_shape, jnp.float32),
        in_specs=[pl.BlockSpec(a.shape) for a in arrays],
        out_specs=pl.BlockSpec(out_shape),
    )(*arrays)


# ----------------------------------------------------------------------------
# Glue (plain JAX): adjacency normalization + batched sort pooling
# ----------------------------------------------------------------------------
def gcn_norm_adj(edge_index, num_nodes):
    """A_hat = D^{-1/2} (A + I) D^{-1/2}, returned in bf16 (MXU operand)."""
    src = edge_index[0]
    dst = edge_index[1]
    a = jnp.zeros((num_nodes, num_nodes), jnp.float32).at[dst, src].set(1.0)
    a = jnp.maximum(a, jnp.eye(num_nodes, dtype=jnp.float32))   # self loops
    deg = a.sum(axis=1)
    dinv = jax.lax.rsqrt(deg)
    return (a * dinv[:, None] * dinv[None, :]).astype(jnp.bfloat16)


def sort_pooling(xc_pad, batch, num_graphs, k, key_col):
    """Batched SortAggregation: per graph, keep the top-k rows sorted by
    feature `key_col` (descending), zero-padding short graphs.
    Returns [num_graphs * k, D_pad] (one conv1 window per row).

    TODO(synk): top_k / gather stay in plain XLA (data-dependent indices);
    everything around them runs in the two fused Pallas kernels.
    """
    key_feat = xc_pad[:, key_col]                               # [N]
    gid = jnp.arange(num_graphs, dtype=batch.dtype)[:, None]    # [G, 1]
    mask = batch[None, :] == gid                                # [G, N]
    keys = jnp.where(mask, key_feat[None, :], -jnp.inf)         # [G, N]
    _, idx = jax.lax.top_k(keys, k)                             # [G, k]
    valid = jnp.take_along_axis(mask, idx, axis=1)              # [G, k]
    rows = xc_pad[idx]                                          # [G, k, D_pad]
    rows = jnp.where(valid[:, :, None], rows, 0.0)
    return rows.reshape(num_graphs * k, xc_pad.shape[1])


# ----------------------------------------------------------------------------
# Model
# ----------------------------------------------------------------------------
def init_params(key, num_features, hidden, k):
    total_dim = hidden * 3 + 1
    dense_dim = int((k - 2) / 2 + 1)
    dense_dim = (dense_dim - 5 + 1) * 32
    ks = jax.random.split(key, 20)
    n = lambda kk, shape, s=0.1: (s * jax.random.normal(kk, shape)).astype(jnp.float32)
    p = {
        "gcn1_w": n(ks[0], (num_features, hidden)), "gcn1_b": n(ks[1], (1, hidden)),
        "gcn2_w": n(ks[2], (hidden, hidden)),       "gcn2_b": n(ks[3], (1, hidden)),
        "gcn3_w": n(ks[4], (hidden, hidden)),       "gcn3_b": n(ks[5], (1, hidden)),
        "gcn4_w": n(ks[6], (hidden, 1)),            "gcn4_b": n(ks[7], (1, 1)),
        # Conv1d(1, 16, kernel=total_dim, stride=total_dim) as matmul [total_dim, 16]
        "conv1_w": n(ks[8], (total_dim, 16)),       "conv1_b": n(ks[9], (1, 16)),
        # Conv1d(16, 32, kernel=5) as matmul over im2col patches [5*16, 32]
        "conv2_w": n(ks[10], (5 * 16, 32)),         "conv2_b": n(ks[11], (1, 32)),
        "cls1_w": n(ks[12], (dense_dim, 128)),      "cls1_b": n(ks[13], (1, 128)),
        "cls2_w": n(ks[14], (128, 2)),              "cls2_b": n(ks[15], (1, 2)),
    }
    return p, total_dim, dense_dim


@functools.partial(jax.jit, static_argnames=("num_graphs", "hidden", "k"))
def dgcnn_forward(params, x, edge_index, batch, num_graphs, hidden, k):
    assert k % 2 == 0, "MaxPool1d(2,2) pairing assumes an even sort-pooling k"
    total_dim = hidden * 3 + 1
    d_pad = ((total_dim + 127) // 128) * 128        # lane-dense feature width
    pad4 = d_pad - 3 * hidden                       # padded width of gcn4 output
    n_nodes = x.shape[0]

    a_hat = gcn_norm_adj(edge_index, n_nodes)       # bf16 [N, N]

    # zero-pad gcn4 (and conv1's input dim) so the concat output is 128-lane dense
    w4_p = jnp.zeros((hidden, pad4), jnp.float32).at[:, 0:1].set(params["gcn4_w"])
    b4_p = jnp.zeros((1, pad4), jnp.float32).at[:, 0:1].set(params["gcn4_b"])
    conv1_w_p = jnp.zeros((d_pad, 16), jnp.float32).at[:total_dim, :].set(params["conv1_w"])

    # --- fused 4x (GCNConv + tanh) + concat (single Pallas kernel) ---
    xc_pad = _whole_array_call(
        dgcnn_gcn_stack_kernel, (n_nodes, d_pad),
        a_hat, x,
        params["gcn1_w"], params["gcn1_b"],
        params["gcn2_w"], params["gcn2_b"],
        params["gcn3_w"], params["gcn3_b"],
        w4_p, b4_p)                                  # [N, d_pad], cols >= total_dim are 0

    # --- SortPooling (batched top-k, XLA glue); key = last real channel (x4) ---
    xs = sort_pooling(xc_pad, batch, num_graphs, k, key_col=total_dim - 1)  # [B*k, d_pad]

    # --- fused conv1 / maxpool / conv2 / classifier head (single Pallas kernel) ---
    head = functools.partial(dgcnn_head_kernel, num_graphs=num_graphs, k=k)
    out = _whole_array_call(
        head, (num_graphs, 2),
        xs, conv1_w_p, params["conv1_b"],
        params["conv2_w"], params["conv2_b"],
        params["cls1_w"], params["cls1_b"],
        params["cls2_w"], params["cls2_b"])
    return out


# ----------------------------------------------------------------------------
if __name__ == "__main__":
    NUM_FEATURES = 4
    HIDDEN = 32
    K = 10                    # sort-pooling k (module floor: max(10, dataset-k))
    NUM_GRAPHS = 2

    # two small graphs: graph 0 has 14 nodes, graph 1 has 10 nodes (ring edges)
    graph_node_ranges = [range(0, 14), range(14, 24)]
    N = 24
    edges = []
    for rng in graph_node_ranges:
        nodes = list(rng)
        for i in range(len(nodes)):
            a, b = nodes[i], nodes[(i + 1) % len(nodes)]
            edges.append((a, b))
            edges.append((b, a))
    edge_index = jnp.asarray(edges, dtype=jnp.int32).T        # [2, E]
    batch = jnp.asarray([0] * 14 + [1] * 10, dtype=jnp.int32)  # [N]

    key = jax.random.PRNGKey(0)
    kx, kp = jax.random.split(key)
    x = jax.random.normal(kx, (N, NUM_FEATURES), dtype=jnp.float32)

    params, total_dim, dense_dim = init_params(kp, NUM_FEATURES, HIDDEN, K)

    out = dgcnn_forward(params, x, edge_index, batch, NUM_GRAPHS, HIDDEN, K)
    out = jax.block_until_ready(out)

    assert out.shape == (NUM_GRAPHS, 2), out.shape
    # log_softmax rows must exponentiate to ~1
    assert bool(jnp.allclose(jnp.exp(out).sum(-1), 1.0, atol=1e-3))
    print("KERNEL_OK")
</pallas_src>

<mosaic_0001>
module attributes {stable_mosaic.version = 11 : i64} {
  func.func @dgcnn_gcn_stack_kernel(%arg0: memref<24x24xbf16, #tpu.memory_space<vmem>>, %arg1: memref<24x4xf32, #tpu.memory_space<vmem>>, %arg2: memref<4x32xf32, #tpu.memory_space<vmem>>, %arg3: memref<1x32xf32, #tpu.memory_space<vmem>>, %arg4: memref<32x32xf32, #tpu.memory_space<vmem>>, %arg5: memref<1x32xf32, #tpu.memory_space<vmem>>, %arg6: memref<32x32xf32, #tpu.memory_space<vmem>>, %arg7: memref<1x32xf32, #tpu.memory_space<vmem>>, %arg8: memref<32x32xf32, #tpu.memory_space<vmem>>, %arg9: memref<1x32xf32, #tpu.memory_space<vmem>>, %arg10: memref<24x128xf32, #tpu.memory_space<vmem>>) attributes {dimension_semantics = [], scalar_prefetch = 0 : i64, scratch_operands = 0 : i64, tpu.core_type = #tpu.core_type<tc>} {
    %c0 = arith.constant 0 : index
    %c0_0 = arith.constant 0 : index
    %0 = vector.load %arg0[%c0, %c0_0] : memref<24x24xbf16, #tpu.memory_space<vmem>>, vector<24x24xbf16>
    %c0_1 = arith.constant 0 : index
    %c0_2 = arith.constant 0 : index
    %1 = vector.load %arg1[%c0_1, %c0_2] : memref<24x4xf32, #tpu.memory_space<vmem>>, vector<24x4xf32>
    %c0_3 = arith.constant 0 : index
    %c0_4 = arith.constant 0 : index
    %2 = vector.load %arg2[%c0_3, %c0_4] : memref<4x32xf32, #tpu.memory_space<vmem>>, vector<4x32xf32>
    %cst = arith.constant dense<0.000000e+00> : vector<24x32xf32>
    %3 = tpu.matmul %1, %2, %cst {dimension_numbers = #tpu.dot_dimension_numbers<[1], [0], [0], [1], [0, 0, 1, 1], [], []>} : vector<24x4xf32>, vector<4x32xf32>, vector<24x32xf32> -> vector<24x32xf32>
    %4 = arith.truncf %3 : vector<24x32xf32> to vector<24x32xbf16>
    %cst_5 = arith.constant dense<0.000000e+00> : vector<24x32xf32>
    %5 = tpu.matmul %0, %4, %cst_5 {dimension_numbers = #tpu.dot_dimension_numbers<[1], [0], [0], [1], [0, 0, 1, 1], [], []>} : vector<24x24xbf16>, vector<24x32xbf16>, vector<24x32xf32> -> vector<24x32xf32>
    %c0_6 = arith.constant 0 : index
    %c0_7 = arith.constant 0 : index
    %6 = vector.load %arg3[%c0_6, %c0_7] : memref<1x32xf32, #tpu.memory_space<vmem>>, vector<1x32xf32>
    %7 = vector.broadcast %6 : vector<1x32xf32> to vector<24x32xf32>
    %8 = arith.addf %5, %7 : vector<24x32xf32>
    %9 = math.tanh %8 : vector<24x32xf32>
    %c0_8 = arith.constant 0 : index
    %c0_9 = arith.constant 0 : index
    %10 = vector.load %arg4[%c0_8, %c0_9] : memref<32x32xf32, #tpu.memory_space<vmem>>, vector<32x32xf32>
    %cst_10 = arith.constant dense<0.000000e+00> : vector<24x32xf32>
    %11 = tpu.matmul %9, %10, %cst_10 {dimension_numbers = #tpu.dot_dimension_numbers<[1], [0], [0], [1], [0, 0, 1, 1], [], []>} : vector<24x32xf32>, vector<32x32xf32>, vector<24x32xf32> -> vector<24x32xf32>
    %12 = arith.truncf %11 : vector<24x32xf32> to vector<24x32xbf16>
    %cst_11 = arith.constant dense<0.000000e+00> : vector<24x32xf32>
    %13 = tpu.matmul %0, %12, %cst_11 {dimension_numbers = #tpu.dot_dimension_numbers<[1], [0], [0], [1], [0, 0, 1, 1], [], []>} : vector<24x24xbf16>, vector<24x32xbf16>, vector<24x32xf32> -> vector<24x32xf32>
    %c0_12 = arith.constant 0 : index
    %c0_13 = arith.constant 0 : index
    %14 = vector.load %arg5[%c0_12, %c0_13] : memref<1x32xf32, #tpu.memory_space<vmem>>, vector<1x32xf32>
    %15 = vector.broadcast %14 : vector<1x32xf32> to vector<24x32xf32>
    %16 = arith.addf %13, %15 : vector<24x32xf32>
    %17 = math.tanh %16 : vector<24x32xf32>
    %c0_14 = arith.constant 0 : index
    %c0_15 = arith.constant 0 : index
    %18 = vector.load %arg6[%c0_14, %c0_15] : memref<32x32xf32, #tpu.memory_space<vmem>>, vector<32x32xf32>
    %cst_16 = arith.constant dense<0.000000e+00> : vector<24x32xf32>
    %19 = tpu.matmul %17, %18, %cst_16 {dimension_numbers = #tpu.dot_dimension_numbers<[1], [0], [0], [1], [0, 0, 1, 1], [], []>} : vector<24x32xf32>, vector<32x32xf32>, vector<24x32xf32> -> vector<24x32xf32>
    %20 = arith.truncf %19 : vector<24x32xf32> to vector<24x32xbf16>
    %cst_17 = arith.constant dense<0.000000e+00> : vector<24x32xf32>
    %21 = tpu.matmul %0, %20, %cst_17 {dimension_numbers = #tpu.dot_dimension_numbers<[1], [0], [0], [1], [0, 0, 1, 1], [], []>} : vector<24x24xbf16>, vector<24x32xbf16>, vector<24x32xf32> -> vector<24x32xf32>
    %c0_18 = arith.constant 0 : index
    %c0_19 = arith.constant 0 : index
    %22 = vector.load %arg7[%c0_18, %c0_19] : memref<1x32xf32, #tpu.memory_space<vmem>>, vector<1x32xf32>
    %23 = vector.broadcast %22 : vector<1x32xf32> to vector<24x32xf32>
    %24 = arith.addf %21, %23 : vector<24x32xf32>
    %25 = math.tanh %24 : vector<24x32xf32>
    %c0_20 = arith.constant 0 : index
    %c0_21 = arith.constant 0 : index
    %26 = vector.load %arg8[%c0_20, %c0_21] : memref<32x32xf32, #tpu.memory_space<vmem>>, vector<32x32xf32>
    %cst_22 = arith.constant dense<0.000000e+00> : vector<24x32xf32>
    %27 = tpu.matmul %25, %26, %cst_22 {dimension_numbers = #tpu.dot_dimension_numbers<[1], [0], [0], [1], [0, 0, 1, 1], [], []>} : vector<24x32xf32>, vector<32x32xf32>, vector<24x32xf32> -> vector<24x32xf32>
    %28 = arith.truncf %27 : vector<24x32xf32> to vector<24x32xbf16>
    %cst_23 = arith.constant dense<0.000000e+00> : vector<24x32xf32>
    %29 = tpu.matmul %0, %28, %cst_23 {dimension_numbers = #tpu.dot_dimension_numbers<[1], [0], [0], [1], [0, 0, 1, 1], [], []>} : vector<24x24xbf16>, vector<24x32xbf16>, vector<24x32xf32> -> vector<24x32xf32>
    %c0_24 = arith.constant 0 : index
    %c0_25 = arith.constant 0 : index
    %30 = vector.load %arg9[%c0_24, %c0_25] : memref<1x32xf32, #tpu.memory_space<vmem>>, vector<1x32xf32>
    %31 = vector.broadcast %30 : vector<1x32xf32> to vector<24x32xf32>
    %32 = arith.addf %29, %31 : vector<24x32xf32>
    %33 = math.tanh %32 : vector<24x32xf32>
    %34 = tpu.concatenate %9, %17, %25, %33 in 1 : vector<24x32xf32>, vector<24x32xf32>, vector<24x32xf32>, vector<24x32xf32> -> vector<24x128xf32>
    %c0_26 = arith.constant 0 : index
    %c0_27 = arith.constant 0 : index
    %35 = vector.load %arg10[%c0_26, %c0_27] : memref<24x128xf32, #tpu.memory_space<vmem>>, vector<24x128xf32>
    tpu.vector_store %arg10[%c0_26, %c0_27], %34 {strides = array<i32>} : memref<24x128xf32, #tpu.memory_space<vmem>>, vector<24x128xf32>,
    return
  }
}

module attributes {stable_mosaic.version = 11 : i64} {
  func.func @dgcnn_head_kernel(%arg0: memref<20x128xf32, #tpu.memory_space<vmem>>, %arg1: memref<128x16xf32, #tpu.memory_space<vmem>>, %arg2: memref<1x16xf32, #tpu.memory_space<vmem>>, %arg3: memref<80x32xf32, #tpu.memory_space<vmem>>, %arg4: memref<1x32xf32, #tpu.memory_space<vmem>>, %arg5: memref<32x128xf32, #tpu.memory_space<vmem>>, %arg6: memref<1x128xf32, #tpu.memory_space<vmem>>, %arg7: memref<128x2xf32, #tpu.memory_space<vmem>>, %arg8: memref<1x2xf32, #tpu.memory_space<vmem>>, %arg9: memref<2x2xf32, #tpu.memory_space<vmem>>) attributes {dimension_semantics = [], scalar_prefetch = 0 : i64, scratch_operands = 0 : i64, tpu.core_type = #tpu.core_type<tc>} {
    %c0 = arith.constant 0 : index
    %c0_0 = arith.constant 0 : index
    %0 = vector.load %arg0[%c0, %c0_0] : memref<20x128xf32, #tpu.memory_space<vmem>>, vector<20x128xf32>
    %c0_1 = arith.constant 0 : index
    %c0_2 = arith.constant 0 : index
    %1 = vector.load %arg1[%c0_1, %c0_2] : memref<128x16xf32, #tpu.memory_space<vmem>>, vector<128x16xf32>
    %cst = arith.constant dense<0.000000e+00> : vector<20x16xf32>
    %2 = tpu.matmul %0, %1, %cst {dimension_numbers = #tpu.dot_dimension_numbers<[1], [0], [0], [1], [0, 0, 1, 1], [], []>} : vector<20x128xf32>, vector<128x16xf32>, vector<20x16xf32> -> vector<20x16xf32>
    %c0_3 = arith.constant 0 : index
    %c0_4 = arith.constant 0 : index
    %3 = vector.load %arg2[%c0_3, %c0_4] : memref<1x16xf32, #tpu.memory_space<vmem>>, vector<1x16xf32>
    %4 = vector.broadcast %3 : vector<1x16xf32> to vector<20x16xf32>
    %5 = arith.addf %2, %4 : vector<20x16xf32>
    %cst_5 = arith.constant 0.000000e+00 : f32
    %6 = vector.broadcast %cst_5 : f32 to vector<20x16xf32>
    %7 = arith.maximumf %5, %6 : vector<20x16xf32>
    %8 = tpu.iota {dimensions = array<i32: 0>} : vector<10x20xi32>
    %9 = tpu.iota {dimensions = array<i32: 1>} : vector<10x20xi32>
    %c2_i32 = arith.constant 2 : i32
    %10 = vector.broadcast %c2_i32 : i32 to vector<10x20xi32>
    %11 = arith.muli %10, %8 : vector<10x20xi32>
    %12 = arith.cmpi eq, %9, %11 : vector<10x20xi32>
    %13 = arith.extui %12 : vector<10x20xi1> to vector<10x20xi32>
    %14 = arith.sitofp %13 : vector<10x20xi32> to vector<10x20xf32>
    %c2_i32_6 = arith.constant 2 : i32
    %15 = vector.broadcast %c2_i32_6 : i32 to vector<10x20xi32>
    %16 = arith.muli %15, %8 : vector<10x20xi32>
    %c1_i32 = arith.constant 1 : i32
    %17 = vector.broadcast %c1_i32 : i32 to vector<10x20xi32>
    %18 = arith.addi %16, %17 : vector<10x20xi32>
    %19 = arith.cmpi eq, %9, %18 : vector<10x20xi32>
    %20 = arith.extui %19 : vector<10x20xi1> to vector<10x20xi32>
    %21 = arith.sitofp %20 : vector<10x20xi32> to vector<10x20xf32>
    %cst_7 = arith.constant dense<0.000000e+00> : vector<10x16xf32>
    %22 = tpu.matmul %14, %7, %cst_7 {dimension_numbers = #tpu.dot_dimension_numbers<[1], [0], [0], [1], [0, 0, 1, 1], [], []>} : vector<10x20xf32>, vector<20x16xf32>, vector<10x16xf32> -> vector<10x16xf32>
    %cst_8 = arith.constant dense<0.000000e+00> : vector<10x16xf32>
    %23 = tpu.matmul %21, %7, %cst_8 {dimension_numbers = #tpu.dot_dimension_numbers<[1], [0], [0], [1], [0, 0, 1, 1], [], []>} : vector<10x20xf32>, vector<20x16xf32>, vector<10x16xf32> -> vector<10x16xf32>
    %24 = arith.maximumf %22, %23 : vector<10x16xf32>
    %c0_9 = arith.constant 0 : index
    %c0_10 = arith.constant 0 : index
    %25 = vector.load %arg3[%c0_9, %c0_10] : memref<80x32xf32, #tpu.memory_space<vmem>>, vector<80x32xf32>
    %26 = tpu.iota {dimensions = array<i32: 0>} : vector<2x10xi32>
    %27 = tpu.iota {dimensions = array<i32: 1>} : vector<2x10xi32>
    %cst_11 = arith.constant 0.000000e+00 : f32
    %28 = vector.broadcast %cst_11 : f32 to vector<2x32xf32>
    %c0_12 = arith.constant 0 : index
    %c0_13 = arith.constant 0 : index
    %29 = vector.load %arg4[%c0_12, %c0_13] : memref<1x32xf32, #tpu.memory_space<vmem>>, vector<1x32xf32>
    %30 = vector.broadcast %29 : vector<1x32xf32> to vector<2x32xf32>
    %31 = arith.addf %28, %30 : vector<2x32xf32>
    %c5_i32 = arith.constant 5 : i32
    %32 = vector.broadcast %c5_i32 : i32 to vector<2x10xi32>
    %33 = arith.muli %26, %32 : vector<2x10xi32>
    %c0_i32 = arith.constant 0 : i32
    %34 = vector.broadcast %c0_i32 : i32 to vector<2x10xi32>
    %35 = arith.addi %33, %34 : vector<2x10xi32>
    %36 = arith.cmpi eq, %27, %35 : vector<2x10xi32>
    %37 = arith.extui %36 : vector<2x10xi1> to vector<2x10xi32>
    %38 = arith.sitofp %37 : vector<2x10xi32> to vector<2x10xf32>
    %cst_14 = arith.constant dense<0.000000e+00> : vector<2x16xf32>
    %39 = tpu.matmul %38, %24, %cst_14 {dimension_numbers = #tpu.dot_dimension_numbers<[1], [0], [0], [1], [0, 0, 1, 1], [], []>} : vector<2x10xf32>, vector<10x16xf32>, vector<2x16xf32> -> vector<2x16xf32>
    %40 = vector.extract_strided_slice %25 {offsets = [0, 0], sizes = [16, 32], strides = [1, 1]} : vector<80x32xf32> to vector<16x32xf32>
    %cst_15 = arith.constant dense<0.000000e+00> : vector<2x32xf32>
    %41 = tpu.matmul %39, %40, %cst_15 {dimension_numbers = #tpu.dot_dimension_numbers<[1], [0], [0], [1], [0, 0, 1, 1], [], []>} : vector<2x16xf32>, vector<16x32xf32>, vector<2x32xf32> -> vector<2x32xf32>
    %42 = arith.addf %31, %41 : vector<2x32xf32>
    %c5_i32_16 = arith.constant 5 : i32
    %43 = vector.broadcast %c5_i32_16 : i32 to vector<2x10xi32>
    %44 = arith.muli %26, %43 : vector<2x10xi32>
    %c1_i32_17 = arith.constant 1 : i32
    %45 = vector.broadcast %c1_i32_17 : i32 to vector<2x10xi32>
    %46 = arith.addi %44, %45 : vector<2x10xi32>
    %47 = arith.cmpi eq, %27, %46 : vector<2x10xi32>
    %48 = arith.extui %47 : vector<2x10xi1> to vector<2x10xi32>
    %49 = arith.sitofp %48 : vector<2x10xi32> to vector<2x10xf32>
    %cst_18 = arith.constant dense<0.000000e+00> : vector<2x16xf32>
    %50 = tpu.matmul %49, %24, %cst_18 {dimension_numbers = #tpu.dot_dimension_numbers<[1], [0], [0], [1], [0, 0, 1, 1], [], []>} : vector<2x10xf32>, vector<10x16xf32>, vector<2x16xf32> -> vector<2x16xf32>
    %51 = vector.extract_strided_slice %25 {offsets = [16, 0], sizes = [16, 32], strides = [1, 1]} : vector<80x32xf32> to vector<16x32xf32>
    %cst_19 = arith.constant dense<0.000000e+00> : vector<2x32xf32>
    %52 = tpu.matmul %50, %51, %cst_19 {dimension_numbers = #tpu.dot_dimension_numbers<[1], [0], [0], [1], [0, 0, 1, 1], [], []>} : vector<2x16xf32>, vector<16x32xf32>, vector<2x32xf32> -> vector<2x32xf32>
    %53 = arith.addf %42, %52 : vector<2x32xf32>
    %c5_i32_20 = arith.constant 5 : i32
    %54 = vector.broadcast %c5_i32_20 : i32 to vector<2x10xi32>
    %55 = arith.muli %26, %54 : vector<2x10xi32>
    %c2_i32_21 = arith.constant 2 : i32
    %56 = vector.broadcast %c2_i32_21 : i32 to vector<2x10xi32>
    %57 = arith.addi %55, %56 : vector<2x10xi32>
    %58 = arith.cmpi eq, %27, %57 : vector<2x10xi32>
    %59 = arith.extui %58 : vector<2x10xi1> to vector<2x10xi32>
    %60 = arith.sitofp %59 : vector<2x10xi32> to vector<2x10xf32>
    %cst_22 = arith.constant dense<0.000000e+00> : vector<2x16xf32>
    %61 = tpu.matmul %60, %24, %cst_22 {dimension_numbers = #tpu.dot_dimension_numbers<[1], [0], [0], [1], [0, 0, 1, 1], [], []>} : vector<2x10xf32>, vector<10x16xf32>, vector<2x16xf32> -> vector<2x16xf32>
    %62 = vector.extract_strided_slice %25 {offsets = [32, 0], sizes = [16, 32], strides = [1, 1]} : vector<80x32xf32> to vector<16x32xf32>
    %cst_23 = arith.constant dense<0.000000e+00> : vector<2x32xf32>
    %63 = tpu.matmul %61, %62, %cst_23 {dimension_numbers = #tpu.dot_dimension_numbers<[1], [0], [0], [1], [0, 0, 1, 1], [], []>} : vector<2x16xf32>, vector<16x32xf32>, vector<2x32xf32> -> vector<2x32xf32>
    %64 = arith.addf %53, %63 : vector<2x32xf32>
    %c5_i32_24 = arith.constant 5 : i32
    %65 = vector.broadcast %c5_i32_24 : i32 to vector<2x10xi32>
    %66 = arith.muli %26, %65 : vector<2x10xi32>
    %c3_i32 = arith.constant 3 : i32
    %67 = vector.broadcast %c3_i32 : i32 to vector<2x10xi32>
    %68 = arith.addi %66, %67 : vector<2x10xi32>
    %69 = arith.cmpi eq, %27, %68 : vector<2x10xi32>
    %70 = arith.extui %69 : vector<2x10xi1> to vector<2x10xi32>
    %71 = arith.sitofp %70 : vector<2x10xi32> to vector<2x10xf32>
    %cst_25 = arith.constant dense<0.000000e+00> : vector<2x16xf32>
    %72 = tpu.matmul %71, %24, %cst_25 {dimension_numbers = #tpu.dot_dimension_numbers<[1], [0], [0], [1], [0, 0, 1, 1], [], []>} : vector<2x10xf32>, vector<10x16xf32>, vector<2x16xf32> -> vector<2x16xf32>
    %73 = vector.extract_strided_slice %25 {offsets = [48, 0], sizes = [16, 32], strides = [1, 1]} : vector<80x32xf32> to vector<16x32xf32>
    %cst_26 = arith.constant dense<0.000000e+00> : vector<2x32xf32>
    %74 = tpu.matmul %72, %73, %cst_26 {dimension_numbers = #tpu.dot_dimension_numbers<[1], [0], [0], [1], [0, 0, 1, 1], [], []>} : vector<2x16xf32>, vector<16x32xf32>, vector<2x32xf32> -> vector<2x32xf32>
    %75 = arith.addf %64, %74 : vector<2x32xf32>
    %c5_i32_27 = arith.constant 5 : i32
    %76 = vector.broadcast %c5_i32_27 : i32 to vector<2x10xi32>
    %77 = arith.muli %26, %76 : vector<2x10xi32>
    %c4_i32 = arith.constant 4 : i32
    %78 = vector.broadcast %c4_i32 : i32 to vector<2x10xi32>
    %79 = arith.addi %77, %78 : vector<2x10xi32>
    %80 = arith.cmpi eq, %27, %79 : vector<2x10xi32>
    %81 = arith.extui %80 : vector<2x10xi1> to vector<2x10xi32>
    %82 = arith.sitofp %81 : vector<2x10xi32> to vector<2x10xf32>
    %cst_28 = arith.constant dense<0.000000e+00> : vector<2x16xf32>
    %83 = tpu.matmul %82, %24, %cst_28 {dimension_numbers = #tpu.dot_dimension_numbers<[1], [0], [0], [1], [0, 0, 1, 1], [], []>} : vector<2x10xf32>, vector<10x16xf32>, vector<2x16xf32> -> vector<2x16xf32>
    %84 = vector.extract_strided_slice %25 {offsets = [64, 0], sizes = [16, 32], strides = [1, 1]} : vector<80x32xf32> to vector<16x32xf32>
    %cst_29 = arith.constant dense<0.000000e+00> : vector<2x32xf32>
    %85 = tpu.matmul %83, %84, %cst_29 {dimension_numbers = #tpu.dot_dimension_numbers<[1], [0], [0], [1], [0, 0, 1, 1], [], []>} : vector<2x16xf32>, vector<16x32xf32>, vector<2x32xf32> -> vector<2x32xf32>
    %86 = arith.addf %75, %85 : vector<2x32xf32>
    %cst_30 = arith.constant 0.000000e+00 : f32
    %87 = vector.broadcast %cst_30 : f32 to vector<2x32xf32>
    %88 = arith.maximumf %86, %87 : vector<2x32xf32>
    %c0_31 = arith.constant 0 : index
    %c0_32 = arith.constant 0 : index
    %89 = vector.load %arg5[%c0_31, %c0_32] : memref<32x128xf32, #tpu.memory_space<vmem>>, vector<32x128xf32>
    %cst_33 = arith.constant dense<0.000000e+00> : vector<2x128xf32>
    %90 = tpu.matmul %88, %89, %cst_33 {dimension_numbers = #tpu.dot_dimension_numbers<[1], [0], [0], [1], [0, 0, 1, 1], [], []>} : vector<2x32xf32>, vector<32x128xf32>, vector<2x128xf32> -> vector<2x128xf32>
    %c0_34 = arith.constant 0 : index
    %c0_35 = arith.constant 0 : index
    %91 = vector.load %arg6[%c0_34, %c0_35] : memref<1x128xf32, #tpu.memory_space<vmem>>, vector<1x128xf32>
    %92 = vector.broadcast %91 : vector<1x128xf32> to vector<2x128xf32>
    %93 = arith.addf %90, %92 : vector<2x128xf32>
    %cst_36 = arith.constant 0.000000e+00 : f32
    %94 = vector.broadcast %cst_36 : f32 to vector<2x128xf32>
    %95 = arith.maximumf %93, %94 : vector<2x128xf32>
    %c0_37 = arith.constant 0 : index
    %c0_38 = arith.constant 0 : index
    %96 = vector.load %arg7[%c0_37, %c0_38] : memref<128x2xf32, #tpu.memory_space<vmem>>, vector<128x2xf32>
    %cst_39 = arith.constant dense<0.000000e+00> : vector<2x2xf32>
    %97 = tpu.matmul %95, %96, %cst_39 {dimension_numbers = #tpu.dot_dimension_numbers<[1], [0], [0], [1], [0, 0, 1, 1], [], []>} : vector<2x128xf32>, vector<128x2xf32>, vector<2x2xf32> -> vector<2x2xf32>
    %c0_40 = arith.constant 0 : index
    %c0_41 = arith.constant 0 : index
    %98 = vector.load %arg8[%c0_40, %c0_41] : memref<1x2xf32, #tpu.memory_space<vmem>>, vector<1x2xf32>
    %99 = vector.broadcast %98 : vector<1x2xf32> to vector<2x2xf32>
    %100 = arith.addf %97, %99 : vector<2x2xf32>
    %cst_42 = arith.constant dense<0xFF800000> : vector<2xf32>
    %101 = vector.multi_reduction <maximumf>, %100, %cst_42 [1] : vector<2x2xf32> to vector<2xf32>
    %102 = vector.shape_cast %101 : vector<2xf32> to vector<2x1xf32>
    %103 = vector.broadcast %102 : vector<2x1xf32> to vector<2x2xf32>
    %104 = arith.subf %100, %103 : vector<2x2xf32>
    %105 = math.exp %104 : vector<2x2xf32>
    %cst_43 = arith.constant dense<0.000000e+00> : vector<2xf32>
    %106 = vector.multi_reduction <add>, %105, %cst_43 [1] : vector<2x2xf32> to vector<2xf32>
    %107 = vector.shape_cast %106 : vector<2xf32> to vector<2x1xf32>
    %108 = math.log %107 : vector<2x1xf32>
    %109 = vector.broadcast %108 : vector<2x1xf32> to vector<2x2xf32>
    %110 = arith.subf %104, %109 : vector<2x2xf32>
    %c0_44 = arith.constant 0 : index
    %c0_45 = arith.constant 0 : index
    %111 = vector.load %arg9[%c0_44, %c0_45] : memref<2x2xf32, #tpu.memory_space<vmem>>, vector<2x2xf32>
    tpu.vector_store %arg9[%c0_44, %c0_45], %110 {strides = array<i32>} : memref<2x2xf32, #tpu.memory_space<vmem>>, vector<2x2xf32>,
    return
  }
}

</mosaic_0001>

<llo_original>
// kernel: dgcnn_forward.2
$region0: #{dgcnn_forward.2}
  #allocation0 [shape = 'u32[]', space=smem, size = 0x4, offset = 0x4, fixed_abs, tag = 'smem constant byte address 0x4 - core index']
  #allocation1 [shape = 'u32[144,128]{1,0:T(1,128)}', space=vmem, size = 0x12000, scoped, tag = 'internal scratch']
  %s0 = inlined_call_operand.vmem [shape: bf16[24,24], index: 0, kind: input, shape index: {}]
  %s1 = inlined_call_operand.vmem [shape: f32[24,4], index: 1, kind: input, shape index: {}]
  %s2 = inlined_call_operand.vmem [shape: f32[4,32], index: 2, kind: input, shape index: {}]
  %s3 = inlined_call_operand.vmem [shape: f32[1,32], index: 3, kind: input, shape index: {}]
  %s4 = inlined_call_operand.vmem [shape: f32[32,32], index: 4, kind: input, shape index: {}]
  %s5 = inlined_call_operand.vmem [shape: f32[1,32], index: 5, kind: input, shape index: {}]
  %s6 = inlined_call_operand.vmem [shape: f32[32,32], index: 6, kind: input, shape index: {}]
  %s7 = inlined_call_operand.vmem [shape: f32[1,32], index: 7, kind: input, shape index: {}]
  %s8 = inlined_call_operand.vmem [shape: f32[32,32], index: 8, kind: input, shape index: {}]
  %s9 = inlined_call_operand.vmem [shape: f32[1,32], index: 9, kind: input, shape index: {}]
  %s10 = inlined_call_operand.vmem [shape: f32[24,128], index: 10, kind: output, shape index: {}]
  %s11 = sld [smem:[#allocation0]]
  $region50: #{dgcnn_forward.2} parent=0
    _
  %s13 = ssub.s32 1, %s11
  %s14 = scalar_select 0, %s13, %s11
  // Predicated region
  $region2: #{dgcnn_forward.2} parent=0 // pred_check
    _
  $region3: #{dgcnn_forward.2} parent=0 // pred_check_branch
    %16 = sbr.rel (0) target = $region5
  $region4: #{dgcnn_forward.2} parent=0 // pred_region
    _
  $region5: #{dgcnn_forward.2} parent=0 // pred_fallthru
    _
  // Predicated region
  $region6: #{dgcnn_forward.2} parent=0 // pred_check
    _
  $region7: #{dgcnn_forward.2} parent=0 // pred_check_branch
    %18 = sbr.rel (0) target = $region9
  $region8: #{dgcnn_forward.2} parent=0 // pred_region
    _
  $region9: #{dgcnn_forward.2} parent=0 // pred_fallthru
    _
  // Predicated region
  $region10: #{dgcnn_forward.2} parent=0 // pred_check
    _
  $region11: #{dgcnn_forward.2} parent=0 // pred_check_branch
    %20 = sbr.rel (0) target = $region13
  $region12: #{dgcnn_forward.2} parent=0 // pred_region
    _
  $region13: #{dgcnn_forward.2} parent=0 // pred_fallthru
    _
  // Predicated region
  $region14: #{dgcnn_forward.2} parent=0 // pred_check
    _
  $region15: #{dgcnn_forward.2} parent=0 // pred_check_branch
    %22 = sbr.rel (0) target = $region17
  $region16: #{dgcnn_forward.2} parent=0 // pred_region
    _
  $region17: #{dgcnn_forward.2} parent=0 // pred_fallthru
    _
  // Predicated region
  $region18: #{dgcnn_forward.2} parent=0 // pred_check
    _
  $region19: #{dgcnn_forward.2} parent=0 // pred_check_branch
    %24 = sbr.rel (0) target = $region21
  $region20: #{dgcnn_forward.2} parent=0 // pred_region
    _
  $region21: #{dgcnn_forward.2} parent=0 // pred_fallthru
    _
  // Predicated region
  $region22: #{dgcnn_forward.2} parent=0 // pred_check
    _
  $region23: #{dgcnn_forward.2} parent=0 // pred_check_branch
    %26 = sbr.rel (0) target = $region25
  $region24: #{dgcnn_forward.2} parent=0 // pred_region
    _
  $region25: #{dgcnn_forward.2} parent=0 // pred_fallthru
    _
  // Predicated region
  $region26: #{dgcnn_forward.2} parent=0 // pred_check
    _
  $region27: #{dgcnn_forward.2} parent=0 // pred_check_branch
    %28 = sbr.rel (0) target = $region29
  $region28: #{dgcnn_forward.2} parent=0 // pred_region
    _
  $region29: #{dgcnn_forward.2} parent=0 // pred_fallthru
    _
  // Predicated region
  $region30: #{dgcnn_forward.2} parent=0 // pred_check
    _
  $region31: #{dgcnn_forward.2} parent=0 // pred_check_branch
    %30 = sbr.rel (0) target = $region33
  $region32: #{dgcnn_forward.2} parent=0 // pred_region
    _
  $region33: #{dgcnn_forward.2} parent=0 // pred_fallthru
    _
  // Predicated region
  $region34: #{dgcnn_forward.2} parent=0 // pred_check
    _
  $region35: #{dgcnn_forward.2} parent=0 // pred_check_branch
    %32 = sbr.rel (0) target = $region37
  $region36: #{dgcnn_forward.2} parent=0 // pred_region
    _
  $region37: #{dgcnn_forward.2} parent=0 // pred_fallthru
    _
  // Predicated region
  $region38: #{dgcnn_forward.2} parent=0 // pred_check
    _
  $region39: #{dgcnn_forward.2} parent=0 // pred_check_branch
    %34 = sbr.rel (0) target = $region41
  $region40: #{dgcnn_forward.2} parent=0 // pred_region
    _
  $region41: #{dgcnn_forward.2} parent=0 // pred_fallthru
    _
  %v36 = vld [vmem:[%s0] sm:$0xf]
  %v37 = vld [vmem:[%s0 + $0x4] sm:$0xf]
  %v38 = vld [vmem:[%s0 + $0x8] sm:$0xf]
  %v39 = vld [vmem:[%s1] sm:$0xff]
  %v40 = vld [vmem:[%s1 + $0x8] sm:$0xff]
  %v41 = vld [vmem:[%s1 + $0x10] sm:$0xff]
  %v42 = vld [vmem:[%s2] sm:$0xf]
  %vm43 = vcmask 31744
  %v45 = vsel %vm43, %v39, 0
  %v48 = vsel %vm43, %v40, 0
  %v51 = vsel %vm43, %v41, 0
  %vm53 = vcmask 1043456
  %v55 = vsel %vm53, %v42, 0
  %57 = vmatprep.subr.mxu0 0.0
  %58 = vmatpush1.msra.mxu0 0.0
  %59 = vmatprep.subr.mxu0 0.0
  %60 = vmatpush1.msra.mxu0 0.0
  %61 = vmatprep.subr.mxu0 0.0
  %62 = vmatpush1.msra.mxu0 0.0
  %63 = vmatprep.subr.mxu0 0.0
  %64 = vmatpush1.msra.mxu0 0.0
  %65 = vmatprep.subr.mxu0 0.0
  %66 = vmatpush1.msra.mxu0 0.0
  %67 = vmatprep.subr.mxu0 0.0
  %68 = vmatpush1.msra.mxu0 0.0
  %69 = vmatprep.subr.mxu0 0.0
  %70 = vmatpush1.msra.mxu0 0.0
  %71 = vmatprep.subr.mxu0 0.0
  %72 = vmatpush1.msra.mxu0 0.0
  %73 = vmatprep.subr.mxu0 0.0
  %74 = vmatpush1.msra.mxu0 0.0
  %75 = vmatprep.subr.mxu0 0.0
  %76 = vmatpush1.msra.mxu0 0.0
  %77 = vmatprep.subr.mxu0 0.0
  %78 = vmatpush1.msra.mxu0 0.0
  %79 = vmatprep.subr.mxu0 0.0
  %80 = vmatpush1.msra.mxu0 0.0
  %81 = vmatprep.subr.mxu0 0.0
  %82 = vmatpush1.msra.mxu0 0.0
  %83 = vmatprep.subr.mxu0 0.0
  %84 = vmatpush1.msra.mxu0 0.0
  %85 = vmatprep.subr.mxu0 0.0
  %86 = vmatpush1.msra.mxu0 0.0
  %87 = vmatprep.subr.mxu0 0.0
  %88 = vmatpush1.msra.mxu0 %v55
  %89 = vmatprep.subr.mxu0 0.0
  %90 = vmatpush2.msra.mxu0 0.0
  %91 = vmatprep.subr.mxu0 0.0
  %92 = vmatpush2.msra.mxu0 0.0
  %93 = vmatprep.subr.mxu0 0.0
  %94 = vmatpush2.msra.mxu0 0.0
  %95 = vmatprep.subr.mxu0 0.0
  %96 = vmatpush2.msra.mxu0 0.0
  %97 = vmatprep.subr.mxu0 0.0
  %98 = vmatpush2.msra.mxu0 0.0
  %99 = vmatprep.subr.mxu0 0.0
  %100 = vmatpush2.msra.mxu0 0.0
  %101 = vmatprep.subr.mxu0 0.0
  %102 = vmatpush2.msra.mxu0 0.0
  %103 = vmatprep.subr.mxu0 0.0
  %104 = vmatpush2.msra.mxu0 0.0
  %105 = vmatprep.subr.mxu0 0.0
  %106 = vmatpush2.msra.mxu0 0.0
  %107 = vmatprep.subr.mxu0 0.0
  %108 = vmatpush2.msra.mxu0 0.0
  %109 = vmatprep.subr.mxu0 0.0
  %110 = vmatpush2.msra.mxu0 0.0
  %111 = vmatprep.subr.mxu0 0.0
  %112 = vmatpush2.msra.mxu0 0.0
  %113 = vmatprep.subr.mxu0 0.0
  %114 = vmatpush2.msra.mxu0 0.0
  %115 = vmatprep.subr.mxu0 0.0
  %116 = vmatpush2.msra.mxu0 0.0
  %117 = vmatprep.subr.mxu0 0.0
  %118 = vmatpush2.msra.mxu0 0.0
  %119 = vmatprep.subr.mxu0 0.0
  %120 = vmatpush2.msra.mxu0 0.0
  %121 = vmatprep.mubr.f32.mxu0 0.0
  %122 = vmatmul.mubr.f32.gmra.mxu0 %v45
  %v123 = vpop.f32.mrf.mxu0
  %v124 = vadd.f32 0.0, %v123
  %v125 = vpop.f32.mrf.mxu0
  %126 = vmatprep.mubr.f32.mxu0 0.0
  %127 = vmatmul.mubr.f32.gmra.mxu0 %v48
  %v128 = vpop.f32.mrf.mxu0
  %v129 = vadd.f32 0.0, %v128
  %v130 = vpop.f32.mrf.mxu0
  %131 = vmatprep.mubr.f32.mxu0 0.0
  %132 = vmatmul.mubr.f32.gmra.mxu0 %v51
  %v133 = vpop.f32.mrf.mxu0
  %v134 = vadd.f32 0.0, %v133
  %v135 = vpop.f32.mrf.mxu0
  %136 = vdwg.mxu0
  %v137 = vpack.c.bf16 %v129, %v124
  %v138 = vpack.c.bf16 %v134, %v134
  %v139 = vld [vmem:[%s3] sm:$0x1]
  %v141 = vlaneseq
  %v142 = vshrl.u32 %v141, 7
  %v143 = vsub.s32 0, %v142
  %v144 = vrot.slane %v139, %v143
  %v149 = vunpack.c.l.b16 %v36
  %v150 = vunpack.c.l.b16 %v37
  %v151 = vunpack.c.l.b16 %v38
  %v152 = vpack.c.b16 %v150, %v149
  %v153 = vpack.c.b16 %v151, %v151
  %vm154 = vcmask 195584
  %v156 = vsel %vm154, %v152, 0
  %v159 = vsel %vm154, %v153, 0
  %v162 = vsel %vm53, %v138, 0
  %164 = vmatprep.subr.bf16.mxu0 0
  %165 = vmatpush1.bf16.msra.mxu0 0
  %166 = vmatprep.subr.bf16.mxu0 0
  %167 = vmatpush1.bf16.msra.mxu0 0
  %168 = vmatprep.subr.bf16.mxu0 0
  %169 = vmatpush1.bf16.msra.mxu0 0
  %170 = vmatprep.subr.bf16.mxu0 0
  %171 = vmatpush1.bf16.msra.mxu0 0
  %172 = vmatprep.subr.bf16.mxu0 0
  %173 = vmatpush1.bf16.msra.mxu0 0
  %174 = vmatprep.subr.bf16.mxu0 0
  %175 = vmatpush1.bf16.msra.mxu0 0
  %176 = vmatprep.subr.bf16.mxu0 0
  %177 = vmatpush1.bf16.msra.mxu0 %v162
  %178 = vmatprep.subr.bf16.mxu0 0
  %179 = vmatpush1.bf16.msra.mxu0 %v137
  %180 = vmatprep.subr.bf16.mxu0 0
  %181 = vmatpush2.bf16.msra.mxu0 0
  %182 = vmatprep.subr.bf16.mxu0 0
  %183 = vmatpush2.bf16.msra.mxu0 0
  %184 = vmatprep.subr.bf16.mxu0 0
  %185 = vmatpush2.bf16.msra.mxu0 0
  %186 = vmatprep.subr.bf16.mxu0 0
  %187 = vmatpush2.bf16.msra.mxu0 0
  %188 = vmatprep.subr.bf16.mxu0 0
  %189 = vmatpush2.bf16.msra.mxu0 0
  %190 = vmatprep.subr.bf16.mxu0 0
  %191 = vmatpush2.bf16.msra.mxu0 0
  %192 = vmatprep.subr.bf16.mxu0 0
  %193 = vmatpush2.bf16.msra.mxu0 0
  %194 = vmatprep.subr.bf16.mxu0 0
  %195 = vmatpush2.bf16.msra.mxu0 0
  %196 = vmatprep.mubr.bf16.mxu0 0
  %197 = vmatmul.mubr.bf16.gmra.mxu0 %v156
  %v198 = vpop.f32.mrf.mxu0
  %v199 = vadd.f32 %v144, %v198
  %v200 = vpop.f32.mrf.mxu0
  %v201 = vpop.f32.mrf.mxu0
  %v202 = vadd.f32 %v144, %v201
  %v203 = vpop.f32.mrf.mxu0
  %204 = vmatprep.mubr.bf16.mxu0 0
  %205 = vmatmul.mubr.bf16.gmra.mxu0 %v159
  %v206 = vpop.f32.mrf.mxu0
  %v207 = vadd.f32 %v144, %v206
  %v208 = vpop.f32.mrf.mxu0
  %v209 = vpop.f32.mrf.mxu0
  %v210 = vpop.f32.mrf.mxu0
  %211 = vdwg.mxu0
  %v212 = vtanh.pop %v199
  %v213 = vtanh.pop %v202
  %v214 = vtanh.pop %v207
  %v215 = vld [vmem:[%s4] sm:$0xff]
  %v216 = vld [vmem:[%s4 + $0x8] sm:$0xff]
  %v217 = vld [vmem:[%s4 + $0x10] sm:$0xff]
  %v218 = vld [vmem:[%s4 + $0x18] sm:$0xff]
  %vm219 = vcmask 261120
  %v221 = vsel %vm219, %v212, 0
  %v224 = vsel %vm219, %v213, 0
  %v227 = vsel %vm219, %v214, 0
  %229 = vmatprep.subr.mxu0 0.0
  %230 = vmatpush1.msra.mxu0 0.0
  %231 = vmatprep.subr.mxu0 0.0
  %232 = vmatpush1.msra.mxu0 0.0
  %233 = vmatprep.subr.mxu0 0.0
  %234 = vmatpush1.msra.mxu0 0.0
  %235 = vmatprep.subr.mxu0 0.0
  %236 = vmatpush1.msra.mxu0 0.0
  %237 = vmatprep.subr.mxu0 0.0
  %238 = vmatpush1.msra.mxu0 0.0
  %239 = vmatprep.subr.mxu0 0.0
  %240 = vmatpush1.msra.mxu0 0.0
  %241 = vmatprep.subr.mxu0 0.0
  %242 = vmatpush1.msra.mxu0 0.0
  %243 = vmatprep.subr.mxu0 0.0
  %244 = vmatpush1.msra.mxu0 0.0
  %245 = vmatprep.subr.mxu0 0.0
  %246 = vmatpush1.msra.mxu0 0.0
  %247 = vmatprep.subr.mxu0 0.0
  %248 = vmatpush1.msra.mxu0 0.0
  %249 = vmatprep.subr.mxu0 0.0
  %250 = vmatpush1.msra.mxu0 0.0
  %251 = vmatprep.subr.mxu0 0.0
  %252 = vmatpush1.msra.mxu0 0.0
  %253 = vmatprep.subr.mxu0 0.0
  %254 = vmatpush1.msra.mxu0 %v218
  %255 = vmatprep.subr.mxu0 0.0
  %256 = vmatpush1.msra.mxu0 %v217
  %257 = vmatprep.subr.mxu0 0.0
  %258 = vmatpush1.msra.mxu0 %v216
  %259 = vmatprep.subr.mxu0 0.0
  %260 = vmatpush1.msra.mxu0 %v215
  %261 = vmatprep.subr.mxu0 0.0
  %262 = vmatpush2.msra.mxu0 0.0
  %263 = vmatprep.subr.mxu0 0.0
  %264 = vmatpush2.msra.mxu0 0.0
  %265 = vmatprep.subr.mxu0 0.0
  %266 = vmatpush2.msra.mxu0 0.0
  %267 = vmatprep.subr.mxu0 0.0
  %268 = vmatpush2.msra.mxu0 0.0
  %269 = vmatprep.subr.mxu0 0.0
  %270 = vmatpush2.msra.mxu0 0.0
  %271 = vmatprep.subr.mxu0 0.0
  %272 = vmatpush2.msra.mxu0 0.0
  %273 = vmatprep.subr.mxu0 0.0
  %274 = vmatpush2.msra.mxu0 0.0
  %275 = vmatprep.subr.mxu0 0.0
  %276 = vmatpush2.msra.mxu0 0.0
  %277 = vmatprep.subr.mxu0 0.0
  %278 = vmatpush2.msra.mxu0 0.0
  %279 = vmatprep.subr.mxu0 0.0
  %280 = vmatpush2.msra.mxu0 0.0
  %281 = vmatprep.subr.mxu0 0.0
  %282 = vmatpush2.msra.mxu0 0.0
  %283 = vmatprep.subr.mxu0 0.0
  %284 = vmatpush2.msra.mxu0 0.0
  %285 = vmatprep.subr.mxu0 0.0
  %286 = vmatpush2.msra.mxu0 0.0
  %287 = vmatprep.subr.mxu0 0.0
  %288 = vmatpush2.msra.mxu0 0.0
  %289 = vmatprep.subr.mxu0 0.0
  %290 = vmatpush2.msra.mxu0 0.0
  %291 = vmatprep.subr.mxu0 0.0
  %292 = vmatpush2.msra.mxu0 0.0
  %293 = vmatprep.mubr.f32.mxu0 0.0
  %294 = vmatmul.mubr.f32.gmra.mxu0 %v221
  %v295 = vpop.f32.mrf.mxu0
  %v296 = vadd.f32 0.0, %v295
  %v297 = vpop.f32.mrf.mxu0
  %298 = vmatprep.mubr.f32.mxu0 0.0
  %299 = vmatmul.mubr.f32.gmra.mxu0 %v224
  %v300 = vpop.f32.mrf.mxu0
  %v301 = vadd.f32 0.0, %v300
  %v302 = vpop.f32.mrf.mxu0
  %303 = vmatprep.mubr.f32.mxu0 0.0
  %304 = vmatmul.mubr.f32.gmra.mxu0 %v227
  %v305 = vpop.f32.mrf.mxu0
  %v306 = vadd.f32 0.0, %v305
  %v307 = vpop.f32.mrf.mxu0
  %308 = vdwg.mxu0
  %v309 = vpack.c.bf16 %v301, %v296
  %v310 = vpack.c.bf16 %v306, %v306
  %v311 = vld [vmem:[%s5] sm:$0x1]
  %v313 = vlaneseq
  %v314 = vshrl.u32 %v313, 7
  %v315 = vsub.s32 0, %v314
  %v316 = vrot.slane %v311, %v315
  %v319 = vsel %vm53, %v310, 0
  %321 = vmatprep.subr.bf16.mxu0 0
  %322 = vmatpush1.bf16.msra.mxu0 0
  %323 = vmatprep.subr.bf16.mxu0 0
  %324 = vmatpush1.bf16.msra.mxu0 0
  %325 = vmatprep.subr.bf16.mxu0 0
  %326 = vmatpush1.bf16.msra.mxu0 0
  %327 = vmatprep.subr.bf16.mxu0 0
  %328 = vmatpush1.bf16.msra.mxu0 0
  %329 = vmatprep.subr.bf16.mxu0 0
  %330 = vmatpush1.bf16.msra.mxu0 0
  %331 = vmatprep.subr.bf16.mxu0 0
  %332 = vmatpush1.bf16.msra.mxu0 0
  %333 = vmatprep.subr.bf16.mxu0 0
  %334 = vmatpush1.bf16.msra.mxu0 %v319
  %335 = vmatprep.subr.bf16.mxu0 0
  %336 = vmatpush1.bf16.msra.mxu0 %v309
  %337 = vmatprep.subr.bf16.mxu0 0
  %338 = vmatpush2.bf16.msra.mxu0 0
  %339 = vmatprep.subr.bf16.mxu0 0
  %340 = vmatpush2.bf16.msra.mxu0 0
  %341 = vmatprep.subr.bf16.mxu0 0
  %342 = vmatpush2.bf16.msra.mxu0 0
  %343 = vmatprep.subr.bf16.mxu0 0
  %344 = vmatpush2.bf16.msra.mxu0 0
  %345 = vmatprep.subr.bf16.mxu0 0
  %346 = vmatpush2.bf16.msra.mxu0 0
  %347 = vmatprep.subr.bf16.mxu0 0
  %348 = vmatpush2.bf16.msra.mxu0 0
  %349 = vmatprep.subr.bf16.mxu0 0
  %350 = vmatpush2.bf16.msra.mxu0 0
  %351 = vmatprep.subr.bf16.mxu0 0
  %352 = vmatpush2.bf16.msra.mxu0 0
  %353 = vmatprep.mubr.bf16.mxu0 0
  %354 = vmatmul.mubr.bf16.gmra.mxu0 %v156
  %v355 = vpop.f32.mrf.mxu0
  %v356 = vadd.f32 %v316, %v355
  %v357 = vpop.f32.mrf.mxu0
  %v358 = vpop.f32.mrf.mxu0
  %v359 = vadd.f32 %v316, %v358
  %v360 = vpop.f32.mrf.mxu0
  %361 = vmatprep.mubr.bf16.mxu0 0
  %362 = vmatmul.mubr.bf16.gmra.mxu0 %v159
  %v363 = vpop.f32.mrf.mxu0
  %v364 = vadd.f32 %v316, %v363
  %v365 = vpop.f32.mrf.mxu0
  %v366 = vpop.f32.mrf.mxu0
  %v367 = vpop.f32.mrf.mxu0
  %368 = vdwg.mxu0
  %v369 = vtanh.pop %v356
  %v370 = vtanh.pop %v359
  %v371 = vtanh.pop %v364
  %v372 = vld [vmem:[%s6] sm:$0xff]
  %v373 = vld [vmem:[%s6 + $0x8] sm:$0xff]
  %v374 = vld [vmem:[%s6 + $0x10] sm:$0xff]
  %v375 = vld [vmem:[%s6 + $0x18] sm:$0xff]
  %v377 = vsel %vm219, %v369, 0
  %v380 = vsel %vm219, %v370, 0
  %v383 = vsel %vm219, %v371, 0
  %385 = vmatprep.subr.mxu0 0.0
  %386 = vmatpush1.msra.mxu0 0.0
  %387 = vmatprep.subr.mxu0 0.0
  %388 = vmatpush1.msra.mxu0 0.0
  %389 = vmatprep.subr.mxu0 0.0
  %390 = vmatpush1.msra.mxu0 0.0
  %391 = vmatprep.subr.mxu0 0.0
  %392 = vmatpush1.msra.mxu0 0.0
  %393 = vmatprep.subr.mxu0 0.0
  %394 = vmatpush1.msra.mxu0 0.0
  %395 = vmatprep.subr.mxu0 0.0
  %396 = vmatpush1.msra.mxu0 0.0
  %397 = vmatprep.subr.mxu0 0.0
  %398 = vmatpush1.msra.mxu0 0.0
  %399 = vmatprep.subr.mxu0 0.0
  %400 = vmatpush1.msra.mxu0 0.0
  %401 = vmatprep.subr.mxu0 0.0
  %402 = vmatpush1.msra.mxu0 0.0
  %403 = vmatprep.subr.mxu0 0.0
  %404 = vmatpush1.msra.mxu0 0.0
  %405 = vmatprep.subr.mxu0 0.0
  %406 = vmatpush1.msra.mxu0 0.0
  %407 = vmatprep.subr.mxu0 0.0
  %408 = vmatpush1.msra.mxu0 0.0
  %409 = vmatprep.subr.mxu0 0.0
  %410 = vmatpush1.msra.mxu0 %v375
  %411 = vmatprep.subr.mxu0 0.0
  %412 = vmatpush1.msra.mxu0 %v374
  %413 = vmatprep.subr.mxu0 0.0
  %414 = vmatpush1.msra.mxu0 %v373
  %415 = vmatprep.subr.mxu0 0.0
  %416 = vmatpush1.msra.mxu0 %v372
  %417 = vmatprep.subr.mxu0 0.0
  %418 = vmatpush2.msra.mxu0 0.0
  %419 = vmatprep.subr.mxu0 0.0
  %420 = vmatpush2.msra.mxu0 0.0
  %421 = vmatprep.subr.mxu0 0.0
  %422 = vmatpush2.msra.mxu0 0.0
  %423 = vmatprep.subr.mxu0 0.0
  %424 = vmatpush2.msra.mxu0 0.0
  %425 = vmatprep.subr.mxu0 0.0
  %426 = vmatpush2.msra.mxu0 0.0
  %427 = vmatprep.subr.mxu0 0.0
  %428 = vmatpush2.msra.mxu0 0.0
  %429 = vmatprep.subr.mxu0 0.0
  %430 = vmatpush2.msra.mxu0 0.0
  %431 = vmatprep.subr.mxu0 0.0
  %432 = vmatpush2.msra.mxu0 0.0
  %433 = vmatprep.subr.mxu0 0.0
  %434 = vmatpush2.msra.mxu0 0.0
  %435 = vmatprep.subr.mxu0 0.0
  %436 = vmatpush2.msra.mxu0 0.0
  %437 = vmatprep.subr.mxu0 0.0
  %438 = vmatpush2.msra.mxu0 0.0
  %439 = vmatprep.subr.mxu0 0.0
  %440 = vmatpush2.msra.mxu0 0.0
  %441 = vmatprep.subr.mxu0 0.0
  %442 = vmatpush2.msra.mxu0 0.0
  %443 = vmatprep.subr.mxu0 0.0
  %444 = vmatpush2.msra.mxu0 0.0
  %445 = vmatprep.subr.mxu0 0.0
  %446 = vmatpush2.msra.mxu0 0.0
  %447 = vmatprep.subr.mxu0 0.0
  %448 = vmatpush2.msra.mxu0 0.0
  %449 = vmatprep.mubr.f32.mxu0 0.0
  %450 = vmatmul.mubr.f32.gmra.mxu0 %v377
  %v451 = vpop.f32.mrf.mxu0
  %v452 = vadd.f32 0.0, %v451
  %v453 = vpop.f32.mrf.mxu0
  %454 = vmatprep.mubr.f32.mxu0 0.0
  %455 = vmatmul.mubr.f32.gmra.mxu0 %v380
  %v456 = vpop.f32.mrf.mxu0
  %v457 = vadd.f32 0.0, %v456
  %v458 = vpop.f32.mrf.mxu0
  %459 = vmatprep.mubr.f32.mxu0 0.0
  %460 = vmatmul.mubr.f32.gmra.mxu0 %v383
  %v461 = vpop.f32.mrf.mxu0
  %v462 = vadd.f32 0.0, %v461
  %v463 = vpop.f32.mrf.mxu0
  %464 = vdwg.mxu0
  %v465 = vpack.c.bf16 %v457, %v452
  %v466 = vpack.c.bf16 %v462, %v462
  %v467 = vld [vmem:[%s7] sm:$0x1]
  %v469 = vlaneseq
  %v470 = vshrl.u32 %v469, 7
  %v471 = vsub.s32 0, %v470
  %v472 = vrot.slane %v467, %v471
  %v475 = vsel %vm53, %v466, 0
  %477 = vmatprep.subr.bf16.mxu0 0
  %478 = vmatpush1.bf16.msra.mxu0 0
  %479 = vmatprep.subr.bf16.mxu0 0
  %480 = vmatpush1.bf16.msra.mxu0 0
  %481 = vmatprep.subr.bf16.mxu0 0
  %482 = vmatpush1.bf16.msra.mxu0 0
  %483 = vmatprep.subr.bf16.mxu0 0
  %484 = vmatpush1.bf16.msra.mxu0 0
  %485 = vmatprep.subr.bf16.mxu0 0
  %486 = vmatpush1.bf16.msra.mxu0 0
  %487 = vmatprep.subr.bf16.mxu0 0
  %488 = vmatpush1.bf16.msra.mxu0 0
  %489 = vmatprep.subr.bf16.mxu0 0
  %490 = vmatpush1.bf16.msra.mxu0 %v475
  %491 = vmatprep.subr.bf16.mxu0 0
  %492 = vmatpush1.bf16.msra.mxu0 %v465
  %493 = vmatprep.subr.bf16.mxu0 0
  %494 = vmatpush2.bf16.msra.mxu0 0
  %495 = vmatprep.subr.bf16.mxu0 0
  %496 = vmatpush2.bf16.msra.mxu0 0
  %497 = vmatprep.subr.bf16.mxu0 0
  %498 = vmatpush2.bf16.msra.mxu0 0
  %499 = vmatprep.subr.bf16.mxu0 0
  %500 = vmatpush2.bf16.msra.mxu0 0
  %501 = vmatprep.subr.bf16.mxu0 0
  %502 = vmatpush2.bf16.msra.mxu0 0
  %503 = vmatprep.subr.bf16.mxu0 0
  %504 = vmatpush2.bf16.msra.mxu0 0
  %505 = vmatprep.subr.bf16.mxu0 0
  %506 = vmatpush2.bf16.msra.mxu0 0
  %507 = vmatprep.subr.bf16.mxu0 0
  %508 = vmatpush2.bf16.msra.mxu0 0
  %509 = vmatprep.mubr.bf16.mxu0 0
  %510 = vmatmul.mubr.bf16.gmra.mxu0 %v156
  %v511 = vpop.f32.mrf.mxu0
  %v512 = vadd.f32 %v472, %v511
  %v513 = vpop.f32.mrf.mxu0
  %v514 = vpop.f32.mrf.mxu0
  %v515 = vadd.f32 %v472, %v514
  %v516 = vpop.f32.mrf.mxu0
  %517 = vmatprep.mubr.bf16.mxu0 0
  %518 = vmatmul.mubr.bf16.gmra.mxu0 %v159
  %v519 = vpop.f32.mrf.mxu0
  %v520 = vadd.f32 %v472, %v519
  %v521 = vpop.f32.mrf.mxu0
  %v522 = vpop.f32.mrf.mxu0
  %v523 = vpop.f32.mrf.mxu0
  %524 = vdwg.mxu0
  %v525 = vtanh.pop %v512
  %v526 = vtanh.pop %v515
  %v527 = vtanh.pop %v520
  %v528 = vld [vmem:[%s8] sm:$0xff]
  %v529 = vld [vmem:[%s8 + $0x8] sm:$0xff]
  %v530 = vld [vmem:[%s8 + $0x10] sm:$0xff]
  %v531 = vld [vmem:[%s8 + $0x18] sm:$0xff]
  %v533 = vsel %vm219, %v525, 0
  %v536 = vsel %vm219, %v526, 0
  %v539 = vsel %vm219, %v527, 0
  %541 = vmatprep.subr.mxu0 0.0
  %542 = vmatpush1.msra.mxu0 0.0
  %543 = vmatprep.subr.mxu0 0.0
  %544 = vmatpush1.msra.mxu0 0.0
  %545 = vmatprep.subr.mxu0 0.0
  %546 = vmatpush1.msra.mxu0 0.0
  %547 = vmatprep.subr.mxu0 0.0
  %548 = vmatpush1.msra.mxu0 0.0
  %549 = vmatprep.subr.mxu0 0.0
  %550 = vmatpush1.msra.mxu0 0.0
  %551 = vmatprep.subr.mxu0 0.0
  %552 = vmatpush1.msra.mxu0 0.0
  %553 = vmatprep.subr.mxu0 0.0
  %554 = vmatpush1.msra.mxu0 0.0
  %555 = vmatprep.subr.mxu0 0.0
  %556 = vmatpush1.msra.mxu0 0.0
  %557 = vmatprep.subr.mxu0 0.0
  %558 = vmatpush1.msra.mxu0 0.0
  %559 = vmatprep.subr.mxu0 0.0
  %560 = vmatpush1.msra.mxu0 0.0
  %561 = vmatprep.subr.mxu0 0.0
  %562 = vmatpush1.msra.mxu0 0.0
  %563 = vmatprep.subr.mxu0 0.0
  %564 = vmatpush1.msra.mxu0 0.0
  %565 = vmatprep.subr.mxu0 0.0
  %566 = vmatpush1.msra.mxu0 %v531
  %567 = vmatprep.subr.mxu0 0.0
  %568 = vmatpush1.msra.mxu0 %v530
  %569 = vmatprep.subr.mxu0 0.0
  %570 = vmatpush1.msra.mxu0 %v529
  %571 = vmatprep.subr.mxu0 0.0
  %572 = vmatpush1.msra.mxu0 %v528
  %573 = vmatprep.subr.mxu0 0.0
  %574 = vmatpush2.msra.mxu0 0.0
  %575 = vmatprep.subr.mxu0 0.0
  %576 = vmatpush2.msra.mxu0 0.0
  %577 = vmatprep.subr.mxu0 0.0
  %578 = vmatpush2.msra.mxu0 0.0
  %579 = vmatprep.subr.mxu0 0.0
  %580 = vmatpush2.msra.mxu0 0.0
  %581 = vmatprep.subr.mxu0 0.0
  %582 = vmatpush2.msra.mxu0 0.0
  %583 = vmatprep.subr.mxu0 0.0
  %584 = vmatpush2.msra.mxu0 0.0
  %585 = vmatprep.subr.mxu0 0.0
  %586 = vmatpush2.msra.mxu0 0.0
  %587 = vmatprep.subr.mxu0 0.0
  %588 = vmatpush2.msra.mxu0 0.0
  %589 = vmatprep.subr.mxu0 0.0
  %590 = vmatpush2.msra.mxu0 0.0
  %591 = vmatprep.subr.mxu0 0.0
  %592 = vmatpush2.msra.mxu0 0.0
  %593 = vmatprep.subr.mxu0 0.0
  %594 = vmatpush2.msra.mxu0 0.0
  %595 = vmatprep.subr.mxu0 0.0
  %596 = vmatpush2.msra.mxu0 0.0
  %597 = vmatprep.subr.mxu0 0.0
  %598 = vmatpush2.msra.mxu0 0.0
  %599 = vmatprep.subr.mxu0 0.0
  %600 = vmatpush2.msra.mxu0 0.0
  %601 = vmatprep.subr.mxu0 0.0
  %602 = vmatpush2.msra.mxu0 0.0
  %603 = vmatprep.subr.mxu0 0.0
  %604 = vmatpush2.msra.mxu0 0.0
  %605 = vmatprep.mubr.f32.mxu0 0.0
  %606 = vmatmul.mubr.f32.gmra.mxu0 %v533
  %v607 = vpop.f32.mrf.mxu0
  %v608 = vadd.f32 0.0, %v607
  %v609 = vpop.f32.mrf.mxu0
  %610 = vmatprep.mubr.f32.mxu0 0.0
  %611 = vmatmul.mubr.f32.gmra.mxu0 %v536
  %v612 = vpop.f32.mrf.mxu0
  %v613 = vadd.f32 0.0, %v612
  %v614 = vpop.f32.mrf.mxu0
  %615 = vmatprep.mubr.f32.mxu0 0.0
  %616 = vmatmul.mubr.f32.gmra.mxu0 %v539
  %v617 = vpop.f32.mrf.mxu0
  %v618 = vadd.f32 0.0, %v617
  %v619 = vpop.f32.mrf.mxu0
  %620 = vdwg.mxu0
  %v621 = vpack.c.bf16 %v613, %v608
  %v622 = vpack.c.bf16 %v618, %v618
  %v623 = vld [vmem:[%s9] sm:$0x1]
  %v625 = vlaneseq
  %v626 = vshrl.u32 %v625, 7
  %v627 = vsub.s32 0, %v626
  %v628 = vrot.slane %v623, %v627
  %v631 = vsel %vm53, %v622, 0
  %633 = vmatprep.subr.bf16.mxu0 0
  %634 = vmatpush1.bf16.msra.mxu0 0
  %635 = vmatprep.subr.bf16.mxu0 0
  %636 = vmatpush1.bf16.msra.mxu0 0
  %637 = vmatprep.subr.bf16.mxu0 0
  %638 = vmatpush1.bf16.msra.mxu0 0
  %639 = vmatprep.subr.bf16.mxu0 0
  %640 = vmatpush1.bf16.msra.mxu0 0
  %641 = vmatprep.subr.bf16.mxu0 0
  %642 = vmatpush1.bf16.msra.mxu0 0
  %643 = vmatprep.subr.bf16.mxu0 0
  %644 = vmatpush1.bf16.msra.mxu0 0
  %645 = vmatprep.subr.bf16.mxu0 0
  %646 = vmatpush1.bf16.msra.mxu0 %v631
  %647 = vmatprep.subr.bf16.mxu0 0
  %648 = vmatpush1.bf16.msra.mxu0 %v621
  %649 = vmatprep.subr.bf16.mxu0 0
  %650 = vmatpush2.bf16.msra.mxu0 0
  %651 = vmatprep.subr.bf16.mxu0 0
  %652 = vmatpush2.bf16.msra.mxu0 0
  %653 = vmatprep.subr.bf16.mxu0 0
  %654 = vmatpush2.bf16.msra.mxu0 0
  %655 = vmatprep.subr.bf16.mxu0 0
  %656 = vmatpush2.bf16.msra.mxu0 0
  %657 = vmatprep.subr.bf16.mxu0 0
  %658 = vmatpush2.bf16.msra.mxu0 0
  %659 = vmatprep.subr.bf16.mxu0 0
  %660 = vmatpush2.bf16.msra.mxu0 0
  %661 = vmatprep.subr.bf16.mxu0 0
  %662 = vmatpush2.bf16.msra.mxu0 0
  %663 = vmatprep.subr.bf16.mxu0 0
  %664 = vmatpush2.bf16.msra.mxu0 0
  %665 = vmatprep.mubr.bf16.mxu0 0
  %666 = vmatmul.mubr.bf16.gmra.mxu0 %v156
  %v667 = vpop.f32.mrf.mxu0
  %v668 = vadd.f32 %v628, %v667
  %v669 = vpop.f32.mrf.mxu0
  %v670 = vpop.f32.mrf.mxu0
  %v671 = vadd.f32 %v628, %v670
  %v672 = vpop.f32.mrf.mxu0
  %673 = vmatprep.mubr.bf16.mxu0 0
  %674 = vmatmul.mubr.bf16.gmra.mxu0 %v159
  %v675 = vpop.f32.mrf.mxu0
  %v676 = vadd.f32 %v628, %v675
  %v677 = vpop.f32.mrf.mxu0
  %v678 = vpop.f32.mrf.mxu0
  %v679 = vpop.f32.mrf.mxu0
  %680 = vdwg.mxu0
  %v681 = vtanh.pop %v668
  %v682 = vtanh.pop %v671
  %v683 = vtanh.pop %v676
  %684 = vrot.lane.b32.xlu0 %v369, 32
  %v685 = vpop.permute.xlu0 %684
  %686 = vrot.lane.b32.xlu0 %v370, 32
  %v687 = vpop.permute.xlu0 %686
  %688 = vrot.lane.b32.xlu0 %v371, 32
  %v689 = vpop.permute.xlu0 %688
  %693 = vrot.lane.b32.xlu0 %v525, 64
  %v694 = vpop.permute.xlu0 %693
  %695 = vrot.lane.b32.xlu0 %v526, 64
  %v696 = vpop.permute.xlu0 %695
  %697 = vrot.lane.b32.xlu0 %v527, 64
  %v698 = vpop.permute.xlu0 %697
  %705 = vrot.lane.b32.xlu0 %v681, 96
  %v706 = vpop.permute.xlu0 %705
  %707 = vrot.lane.b32.xlu0 %v682, 96
  %v708 = vpop.permute.xlu0 %707
  %709 = vrot.lane.b32.xlu0 %v683, 96
  %v710 = vpop.permute.xlu0 %709
  %v714 = vsel %vm219, %v212, %v685
  %v715 = vsel %vm219, %v213, %v687
  %v716 = vsel %vm219, %v214, %v689
  %vm717 = vcmask 523264
  %v718 = vsel %vm717, %v714, %v694
  %v719 = vsel %vm717, %v715, %v696
  %v720 = vsel %vm717, %v716, %v698
  %vm721 = vcmask 785408
  %v722 = vsel %vm721, %v718, %v706
  %v723 = vsel %vm721, %v719, %v708
  %v724 = vsel %vm721, %v720, %v710
  %725 = vst [vmem:[%s10] sm:$0xff] %v722
  %726 = vst [vmem:[%s10 + $0x8] sm:$0xff] %v723
  %727 = vst [vmem:[%s10 + $0x10] sm:$0xff] %v724
  // Predicated region
  $region42: #{dgcnn_forward.2} parent=0 // pred_check
    _
  $region43: #{dgcnn_forward.2} parent=0 // pred_check_branch
    %729 = sbr.rel (0) target = $region45
  $region44: #{dgcnn_forward.2} parent=0 // pred_region
    _
  $region45: #{dgcnn_forward.2} parent=0 // pred_fallthru
    _
  // Predicated region
  $region46: #{dgcnn_forward.2} parent=0 // pred_check
    _
  $region47: #{dgcnn_forward.2} parent=0 // pred_check_branch
    %731 = sbr.rel (0) target = $region49
  $region48: #{dgcnn_forward.2} parent=0 // pred_region
    _
  $region49: #{dgcnn_forward.2} parent=0 // pred_fallthru
    _

// kernel: dgcnn_forward.3
$region0: #{dgcnn_forward.3}
  #allocation0 [shape = 'u32[]', space=smem, size = 0x4, offset = 0x4, fixed_abs, tag = 'smem constant byte address 0x4 - core index']
  #allocation1 [shape = 'u32[144,128]{1,0:T(1,128)}', space=vmem, size = 0x12000, scoped, tag = 'internal scratch']
  %s0 = inlined_call_operand.vmem [shape: f32[20,128], index: 0, kind: input, shape index: {}]
  %s1 = inlined_call_operand.vmem [shape: f32[128,16], index: 1, kind: input, shape index: {}]
  %s2 = inlined_call_operand.vmem [shape: f32[1,16], index: 2, kind: input, shape index: {}]
  %s3 = inlined_call_operand.vmem [shape: f32[80,32], index: 3, kind: input, shape index: {}]
  %s4 = inlined_call_operand.vmem [shape: f32[1,32], index: 4, kind: input, shape index: {}]
  %s5 = inlined_call_operand.vmem [shape: f32[32,128], index: 5, kind: input, shape index: {}]
  %s6 = inlined_call_operand.vmem [shape: f32[1,128], index: 6, kind: input, shape index: {}]
  %s7 = inlined_call_operand.vmem [shape: f32[128,2], index: 7, kind: input, shape index: {}]
  %s8 = inlined_call_operand.vmem [shape: f32[1,2], index: 8, kind: input, shape index: {}]
  %s9 = inlined_call_operand.hbm [shape: f32[2,2], index: 9, kind: output, shape index: {}]
  %s10 = sld [smem:[#allocation0]]
  $region46: #{dgcnn_forward.3} parent=0
    _
  %s12 = ssub.s32 1, %s10
  %s13 = scalar_select 0, %s12, %s10
  $region1: #{dgcnn_forward.3} parent=0
    #allocation2 [shape = 'u8[1024]{0}', space=vmem, size = 0x400, scoped, tag = 'output window, operand 0, single buffered']
    #allocation3 [shape = 's32[1]{0}', space=sflag, size = 0x4, scoped, tag = 'scoped memory for dgcnn_forward.3']
    %14 = vsyncpa [#allocation3], 0
    // Predicated region
    $region2: #{dgcnn_forward.3} parent=1 // pred_check
      _
    $region3: #{dgcnn_forward.3} parent=1 // pred_check_branch
      %16 = sbr.rel (0) target = $region5
    $region4: #{dgcnn_forward.3} parent=1 // pred_region
      _
    $region5: #{dgcnn_forward.3} parent=1 // pred_fallthru
      _
    // Predicated region
    $region6: #{dgcnn_forward.3} parent=1 // pred_check
      _
    $region7: #{dgcnn_forward.3} parent=1 // pred_check_branch
      %18 = sbr.rel (0) target = $region9
    $region8: #{dgcnn_forward.3} parent=1 // pred_region
      _
    $region9: #{dgcnn_forward.3} parent=1 // pred_fallthru
      _
    // Predicated region
    $region10: #{dgcnn_forward.3} parent=1 // pred_check
      _
    $region11: #{dgcnn_forward.3} parent=1 // pred_check_branch
      %20 = sbr.rel (0) target = $region13
    $region12: #{dgcnn_forward.3} parent=1 // pred_region
      _
    $region13: #{dgcnn_forward.3} parent=1 // pred_fallthru
      _
    // Predicated region
    $region14: #{dgcnn_forward.3} parent=1 // pred_check
      _
    $region15: #{dgcnn_forward.3} parent=1 // pred_check_branch
      %22 = sbr.rel (0) target = $region17
    $region16: #{dgcnn_forward.3} parent=1 // pred_region
      _
    $region17: #{dgcnn_forward.3} parent=1 // pred_fallthru
      _
    // Predicated region
    $region18: #{dgcnn_forward.3} parent=1 // pred_check
      _
    $region19: #{dgcnn_forward.3} parent=1 // pred_check_branch
      %24 = sbr.rel (0) target = $region21
    $region20: #{dgcnn_forward.3} parent=1 // pred_region
      _
    $region21: #{dgcnn_forward.3} parent=1 // pred_fallthru
      _
    // Predicated region
    $region22: #{dgcnn_forward.3} parent=1 // pred_check
      _
    $region23: #{dgcnn_forward.3} parent=1 // pred_check_branch
      %26 = sbr.rel (0) target = $region25
    $region24: #{dgcnn_forward.3} parent=1 // pred_region
      _
    $region25: #{dgcnn_forward.3} parent=1 // pred_fallthru
      _
    // Predicated region
    $region26: #{dgcnn_forward.3} parent=1 // pred_check
      _
    $region27: #{dgcnn_forward.3} parent=1 // pred_check_branch
      %28 = sbr.rel (0) target = $region29
    $region28: #{dgcnn_forward.3} parent=1 // pred_region
      _
    $region29: #{dgcnn_forward.3} parent=1 // pred_fallthru
      _
    // Predicated region
    $region30: #{dgcnn_forward.3} parent=1 // pred_check
      _
    $region31: #{dgcnn_forward.3} parent=1 // pred_check_branch
      %30 = sbr.rel (0) target = $region33
    $region32: #{dgcnn_forward.3} parent=1 // pred_region
      _
    $region33: #{dgcnn_forward.3} parent=1 // pred_fallthru
      _
    // Predicated region
    $region34: #{dgcnn_forward.3} parent=1 // pred_check
      _
    $region35: #{dgcnn_forward.3} parent=1 // pred_check_branch
      %32 = sbr.rel (0) target = $region37
    $region36: #{dgcnn_forward.3} parent=1 // pred_region
      _
    $region37: #{dgcnn_forward.3} parent=1 // pred_fallthru
      _
    %v33 = vld [vmem:[%s0] sm:$0xff]
    %v34 = vld [vmem:[%s0 + $0x8] sm:$0xff]
    %v35 = vld [vmem:[%s0 + $0x10] sm:$0xf]
    %v36 = vld [vmem:[%s1] sm:$0xff]
    %v37 = vld [vmem:[%s1 + $0x8] sm:$0xff]
    %v38 = vld [vmem:[%s1 + $0x10] sm:$0xff]
    %v39 = vld [vmem:[%s1 + $0x18] sm:$0xff]
    %v40 = vld [vmem:[%s1 + $0x20] sm:$0xff]
    %v41 = vld [vmem:[%s1 + $0x28] sm:$0xff]
    %v42 = vld [vmem:[%s1 + $0x30] sm:$0xff]
    %v43 = vld [vmem:[%s1 + $0x38] sm:$0xff]
    %v44 = vld [vmem:[%s1 + $0x40] sm:$0xff]
    %v45 = vld [vmem:[%s1 + $0x48] sm:$0xff]
    %v46 = vld [vmem:[%s1 + $0x50] sm:$0xff]
    %v47 = vld [vmem:[%s1 + $0x58] sm:$0xff]
    %v48 = vld [vmem:[%s1 + $0x60] sm:$0xff]
    %v49 = vld [vmem:[%s1 + $0x68] sm:$0xff]
    %v50 = vld [vmem:[%s1 + $0x70] sm:$0xff]
    %v51 = vld [vmem:[%s1 + $0x78] sm:$0xff]
    %v52 = vld [vmem:[%s2] sm:$0x1]
    %v54 = vlaneseq
    %v55 = vshrl.u32 %v54, 7
    %v56 = vsub.s32 0, %v55
    %v57 = vrot.slane %v52, %v56
    %59 = vmatprep.subr.mxu0 0.0
    %60 = vmatpush1.msra.mxu0 %v51
    %61 = vmatprep.subr.mxu0 0.0
    %62 = vmatpush1.msra.mxu0 %v50
    %63 = vmatprep.subr.mxu0 0.0
    %64 = vmatpush1.msra.mxu0 %v49
    %65 = vmatprep.subr.mxu0 0.0
    %66 = vmatpush1.msra.mxu0 %v48
    %67 = vmatprep.subr.mxu0 0.0
    %68 = vmatpush1.msra.mxu0 %v47
    %69 = vmatprep.subr.mxu0 0.0
    %70 = vmatpush1.msra.mxu0 %v46
    %71 = vmatprep.subr.mxu0 0.0
    %72 = vmatpush1.msra.mxu0 %v45
    %73 = vmatprep.subr.mxu0 0.0
    %74 = vmatpush1.msra.mxu0 %v44
    %75 = vmatprep.subr.mxu0 0.0
    %76 = vmatpush1.msra.mxu0 %v43
    %77 = vmatprep.subr.mxu0 0.0
    %78 = vmatpush1.msra.mxu0 %v42
    %79 = vmatprep.subr.mxu0 0.0
    %80 = vmatpush1.msra.mxu0 %v41
    %81 = vmatprep.subr.mxu0 0.0
    %82 = vmatpush1.msra.mxu0 %v40
    %83 = vmatprep.subr.mxu0 0.0
    %84 = vmatpush1.msra.mxu0 %v39
    %85 = vmatprep.subr.mxu0 0.0
    %86 = vmatpush1.msra.mxu0 %v38
    %87 = vmatprep.subr.mxu0 0.0
    %88 = vmatpush1.msra.mxu0 %v37
    %89 = vmatprep.subr.mxu0 0.0
    %90 = vmatpush1.msra.mxu0 %v36
    %91 = vmatprep.subr.mxu0 0.0
    %92 = vmatpush2.msra.mxu0 0.0
    %93 = vmatprep.subr.mxu0 0.0
    %94 = vmatpush2.msra.mxu0 0.0
    %95 = vmatprep.subr.mxu0 0.0
    %96 = vmatpush2.msra.mxu0 0.0
    %97 = vmatprep.subr.mxu0 0.0
    %98 = vmatpush2.msra.mxu0 0.0
    %99 = vmatprep.subr.mxu0 0.0
    %100 = vmatpush2.msra.mxu0 0.0
    %101 = vmatprep.subr.mxu0 0.0
    %102 = vmatpush2.msra.mxu0 0.0
    %103 = vmatprep.subr.mxu0 0.0
    %104 = vmatpush2.msra.mxu0 0.0
    %105 = vmatprep.subr.mxu0 0.0
    %106 = vmatpush2.msra.mxu0 0.0
    %107 = vmatprep.subr.mxu0 0.0
    %108 = vmatpush2.msra.mxu0 0.0
    %109 = vmatprep.subr.mxu0 0.0
    %110 = vmatpush2.msra.mxu0 0.0
    %111 = vmatprep.subr.mxu0 0.0
    %112 = vmatpush2.msra.mxu0 0.0
    %113 = vmatprep.subr.mxu0 0.0
    %114 = vmatpush2.msra.mxu0 0.0
    %115 = vmatprep.subr.mxu0 0.0
    %116 = vmatpush2.msra.mxu0 0.0
    %117 = vmatprep.subr.mxu0 0.0
    %118 = vmatpush2.msra.mxu0 0.0
    %119 = vmatprep.subr.mxu0 0.0
    %120 = vmatpush2.msra.mxu0 0.0
    %121 = vmatprep.subr.mxu0 0.0
    %122 = vmatpush2.msra.mxu0 0.0
    %123 = vmatprep.mubr.f32.mxu0 0.0
    %124 = vmatmul.mubr.f32.gmra.mxu0 %v33
    %v125 = vpop.f32.mrf.mxu0
    %v126 = vadd.f32 %v57, %v125
    %v127 = vpop.f32.mrf.mxu0
    %128 = vmatprep.mubr.f32.mxu0 0.0
    %129 = vmatmul.mubr.f32.gmra.mxu0 %v34
    %v130 = vpop.f32.mrf.mxu0
    %v131 = vadd.f32 %v57, %v130
    %v132 = vpop.f32.mrf.mxu0
    %133 = vmatprep.mubr.f32.mxu0 0.0
    %134 = vmatmul.mubr.f32.gmra.mxu0 %v35
    %v135 = vpop.f32.mrf.mxu0
    %v136 = vadd.f32 %v57, %v135
    %v137 = vpop.f32.mrf.mxu0
    %138 = vdwg.mxu0
    %v139 = vmax.f32 %v126, 0.0
    %v140 = vmax.f32 %v131, 0.0
    %v141 = vmax.f32 %v136, 0.0
    %v142 = vlaneseq
    %v143 = vshrl.u32 %v142, 7
    %v144 = vadd.s32 %v143, 8
    %v145 = vlaneseq
    %v146 = vand.u32 %v145, 127
    %v147 = vmul.u32 %v143, 2
    %v148 = vmul.u32 %v144, 2
    %vm149 = vcmp.eq.s32.totalorder %v146, %v147
    %vm150 = vcmp.eq.s32.totalorder %v146, %v148
    %v151 = vsel %vm149, 1, 0
    %v152 = vsel %vm150, 1, 0
    %v153 = vcvt.s32.f32 %v151
    %v154 = vcvt.s32.f32 %v152
    %v155 = vadd.s32 %v147, 1
    %v156 = vadd.s32 %v148, 1
    %vm157 = vcmp.eq.s32.totalorder %v146, %v155
    %vm158 = vcmp.eq.s32.totalorder %v146, %v156
    %v159 = vsel %vm157, 1, 0
    %v160 = vsel %vm158, 1, 0
    %v161 = vcvt.s32.f32 %v159
    %v162 = vcvt.s32.f32 %v160
    %vm163 = vcmask 162816
    %v165 = vsel %vm163, %v153, 0
    %v168 = vsel %vm163, %v154, 0
    %vm170 = vcmask 1043456
    %v172 = vsel %vm170, %v141, 0
    %174 = vmatprep.subr.mxu0 0.0
    %175 = vmatpush1.msra.mxu0 0.0
    %176 = vmatprep.subr.mxu0 0.0
    %177 = vmatpush1.msra.mxu0 0.0
    %178 = vmatprep.subr.mxu0 0.0
    %179 = vmatpush1.msra.mxu0 0.0
    %180 = vmatprep.subr.mxu0 0.0
    %181 = vmatpush1.msra.mxu0 0.0
    %182 = vmatprep.subr.mxu0 0.0
    %183 = vmatpush1.msra.mxu0 0.0
    %184 = vmatprep.subr.mxu0 0.0
    %185 = vmatpush1.msra.mxu0 0.0
    %186 = vmatprep.subr.mxu0 0.0
    %187 = vmatpush1.msra.mxu0 0.0
    %188 = vmatprep.subr.mxu0 0.0
    %189 = vmatpush1.msra.mxu0 0.0
    %190 = vmatprep.subr.mxu0 0.0
    %191 = vmatpush1.msra.mxu0 0.0
    %192 = vmatprep.subr.mxu0 0.0
    %193 = vmatpush1.msra.mxu0 0.0
    %194 = vmatprep.subr.mxu0 0.0
    %195 = vmatpush1.msra.mxu0 0.0
    %196 = vmatprep.subr.mxu0 0.0
    %197 = vmatpush1.msra.mxu0 0.0
    %198 = vmatprep.subr.mxu0 0.0
    %199 = vmatpush1.msra.mxu0 0.0
    %200 = vmatprep.subr.mxu0 0.0
    %201 = vmatpush1.msra.mxu0 %v172
    %202 = vmatprep.subr.mxu0 0.0
    %203 = vmatpush1.msra.mxu0 %v140
    %204 = vmatprep.subr.mxu0 0.0
    %205 = vmatpush1.msra.mxu0 %v139
    %206 = vmatprep.subr.mxu0 0.0
    %207 = vmatpush2.msra.mxu0 0.0
    %208 = vmatprep.subr.mxu0 0.0
    %209 = vmatpush2.msra.mxu0 0.0
    %210 = vmatprep.subr.mxu0 0.0
    %211 = vmatpush2.msra.mxu0 0.0
    %212 = vmatprep.subr.mxu0 0.0
    %213 = vmatpush2.msra.mxu0 0.0
    %214 = vmatprep.subr.mxu0 0.0
    %215 = vmatpush2.msra.mxu0 0.0
    %216 = vmatprep.subr.mxu0 0.0
    %217 = vmatpush2.msra.mxu0 0.0
    %218 = vmatprep.subr.mxu0 0.0
    %219 = vmatpush2.msra.mxu0 0.0
    %220 = vmatprep.subr.mxu0 0.0
    %221 = vmatpush2.msra.mxu0 0.0
    %222 = vmatprep.subr.mxu0 0.0
    %223 = vmatpush2.msra.mxu0 0.0
    %224 = vmatprep.subr.mxu0 0.0
    %225 = vmatpush2.msra.mxu0 0.0
    %226 = vmatprep.subr.mxu0 0.0
    %227 = vmatpush2.msra.mxu0 0.0
    %228 = vmatprep.subr.mxu0 0.0
    %229 = vmatpush2.msra.mxu0 0.0
    %230 = vmatprep.subr.mxu0 0.0
    %231 = vmatpush2.msra.mxu0 0.0
    %232 = vmatprep.subr.mxu0 0.0
    %233 = vmatpush2.msra.mxu0 0.0
    %234 = vmatprep.subr.mxu0 0.0
    %235 = vmatpush2.msra.mxu0 0.0
    %236 = vmatprep.subr.mxu0 0.0
    %237 = vmatpush2.msra.mxu0 0.0
    %238 = vmatprep.mubr.f32.mxu0 0.0
    %239 = vmatmul.mubr.f32.gmra.mxu0 %v165
    %v240 = vpop.f32.mrf.mxu0
    %v241 = vadd.f32 0.0, %v240
    %v242 = vpop.f32.mrf.mxu0
    %243 = vmatprep.mubr.f32.mxu0 0.0
    %244 = vmatmul.mubr.f32.gmra.mxu0 %v168
    %v245 = vpop.f32.mrf.mxu0
    %v246 = vadd.f32 0.0, %v245
    %v247 = vpop.f32.mrf.mxu0
    %248 = vdwg.mxu0
    %v250 = vsel %vm163, %v161, 0
    %v253 = vsel %vm163, %v162, 0
    %255 = vmatprep.subr.mxu0 0.0
    %256 = vmatpush1.msra.mxu0 0.0
    %257 = vmatprep.subr.mxu0 0.0
    %258 = vmatpush1.msra.mxu0 0.0
    %259 = vmatprep.subr.mxu0 0.0
    %260 = vmatpush1.msra.mxu0 0.0
    %261 = vmatprep.subr.mxu0 0.0
    %262 = vmatpush1.msra.mxu0 0.0
    %263 = vmatprep.subr.mxu0 0.0
    %264 = vmatpush1.msra.mxu0 0.0
    %265 = vmatprep.subr.mxu0 0.0
    %266 = vmatpush1.msra.mxu0 0.0
    %267 = vmatprep.subr.mxu0 0.0
    %268 = vmatpush1.msra.mxu0 0.0
    %269 = vmatprep.subr.mxu0 0.0
    %270 = vmatpush1.msra.mxu0 0.0
    %271 = vmatprep.subr.mxu0 0.0
    %272 = vmatpush1.msra.mxu0 0.0
    %273 = vmatprep.subr.mxu0 0.0
    %274 = vmatpush1.msra.mxu0 0.0
    %275 = vmatprep.subr.mxu0 0.0
    %276 = vmatpush1.msra.mxu0 0.0
    %277 = vmatprep.subr.mxu0 0.0
    %278 = vmatpush1.msra.mxu0 0.0
    %279 = vmatprep.subr.mxu0 0.0
    %280 = vmatpush1.msra.mxu0 0.0
    %281 = vmatprep.subr.mxu0 0.0
    %282 = vmatpush1.msra.mxu0 %v172
    %283 = vmatprep.subr.mxu0 0.0
    %284 = vmatpush1.msra.mxu0 %v140
    %285 = vmatprep.subr.mxu0 0.0
    %286 = vmatpush1.msra.mxu0 %v139
    %287 = vmatprep.subr.mxu0 0.0
    %288 = vmatpush2.msra.mxu0 0.0
    %289 = vmatprep.subr.mxu0 0.0
    %290 = vmatpush2.msra.mxu0 0.0
    %291 = vmatprep.subr.mxu0 0.0
    %292 = vmatpush2.msra.mxu0 0.0
    %293 = vmatprep.subr.mxu0 0.0
    %294 = vmatpush2.msra.mxu0 0.0
    %295 = vmatprep.subr.mxu0 0.0
    %296 = vmatpush2.msra.mxu0 0.0
    %297 = vmatprep.subr.mxu0 0.0
    %298 = vmatpush2.msra.mxu0 0.0
    %299 = vmatprep.subr.mxu0 0.0
    %300 = vmatpush2.msra.mxu0 0.0
    %301 = vmatprep.subr.mxu0 0.0
    %302 = vmatpush2.msra.mxu0 0.0
    %303 = vmatprep.subr.mxu0 0.0
    %304 = vmatpush2.msra.mxu0 0.0
    %305 = vmatprep.subr.mxu0 0.0
    %306 = vmatpush2.msra.mxu0 0.0
    %307 = vmatprep.subr.mxu0 0.0
    %308 = vmatpush2.msra.mxu0 0.0
    %309 = vmatprep.subr.mxu0 0.0
    %310 = vmatpush2.msra.mxu0 0.0
    %311 = vmatprep.subr.mxu0 0.0
    %312 = vmatpush2.msra.mxu0 0.0
    %313 = vmatprep.subr.mxu0 0.0
    %314 = vmatpush2.msra.mxu0 0.0
    %315 = vmatprep.subr.mxu0 0.0
    %316 = vmatpush2.msra.mxu0 0.0
    %317 = vmatprep.subr.mxu0 0.0
    %318 = vmatpush2.msra.mxu0 0.0
    %319 = vmatprep.mubr.f32.mxu0 0.0
    %320 = vmatmul.mubr.f32.gmra.mxu0 %v250
    %v321 = vpop.f32.mrf.mxu0
    %v322 = vadd.f32 0.0, %v321
    %v323 = vpop.f32.mrf.mxu0
    %324 = vmatprep.mubr.f32.mxu0 0.0
    %325 = vmatmul.mubr.f32.gmra.mxu0 %v253
    %v326 = vpop.f32.mrf.mxu0
    %v327 = vadd.f32 0.0, %v326
    %v328 = vpop.f32.mrf.mxu0
    %329 = vdwg.mxu0
    %v330 = vmax.f32 %v241, %v322
    %v331 = vmax.f32 %v246, %v327
    %v332 = vld [vmem:[%s3] sm:$0xff]
    %v333 = vld [vmem:[%s3 + $0x8] sm:$0xff]
    %v334 = vld [vmem:[%s3 + $0x10] sm:$0xff]
    %v335 = vld [vmem:[%s3 + $0x18] sm:$0xff]
    %v336 = vld [vmem:[%s3 + $0x20] sm:$0xff]
    %v337 = vld [vmem:[%s3 + $0x28] sm:$0xff]
    %v338 = vld [vmem:[%s3 + $0x30] sm:$0xff]
    %v339 = vld [vmem:[%s3 + $0x38] sm:$0xff]
    %v340 = vld [vmem:[%s3 + $0x40] sm:$0xff]
    %v341 = vld [vmem:[%s3 + $0x48] sm:$0xff]
    %v342 = vld [vmem:[%s4] sm:$0x1]
    %v344 = vlaneseq
    %v345 = vshrl.u32 %v344, 7
    %v346 = vsub.s32 0, %v345
    %v347 = vrot.slane %v342, %v346
    %v349 = vadd.f32 %v347, 0.0
    %v350 = vmul.u32 %v143, 5
    %vm351 = vcmp.eq.s32.totalorder %v146, %v350
    %v352 = vsel %vm351, 1, 0
    %v353 = vcvt.s32.f32 %v352
    %vm354 = vcmask 80896
    %v356 = vsel %vm354, %v353, 0
    %vm358 = vcmask 1041408
    %v360 = vsel %vm358, %v331, 0
    %362 = vmatprep.subr.mxu0 0.0
    %363 = vmatpush1.msra.mxu0 0.0
    %364 = vmatprep.subr.mxu0 0.0
    %365 = vmatpush1.msra.mxu0 0.0
    %366 = vmatprep.subr.mxu0 0.0
    %367 = vmatpush1.msra.mxu0 0.0
    %368 = vmatprep.subr.mxu0 0.0
    %369 = vmatpush1.msra.mxu0 0.0
    %370 = vmatprep.subr.mxu0 0.0
    %371 = vmatpush1.msra.mxu0 0.0
    %372 = vmatprep.subr.mxu0 0.0
    %373 = vmatpush1.msra.mxu0 0.0
    %374 = vmatprep.subr.mxu0 0.0
    %375 = vmatpush1.msra.mxu0 0.0
    %376 = vmatprep.subr.mxu0 0.0
    %377 = vmatpush1.msra.mxu0 0.0
    %378 = vmatprep.subr.mxu0 0.0
    %379 = vmatpush1.msra.mxu0 0.0
    %380 = vmatprep.subr.mxu0 0.0
    %381 = vmatpush1.msra.mxu0 0.0
    %382 = vmatprep.subr.mxu0 0.0
    %383 = vmatpush1.msra.mxu0 0.0
    %384 = vmatprep.subr.mxu0 0.0
    %385 = vmatpush1.msra.mxu0 0.0
    %386 = vmatprep.subr.mxu0 0.0
    %387 = vmatpush1.msra.mxu0 0.0
    %388 = vmatprep.subr.mxu0 0.0
    %389 = vmatpush1.msra.mxu0 0.0
    %390 = vmatprep.subr.mxu0 0.0
    %391 = vmatpush1.msra.mxu0 %v360
    %392 = vmatprep.subr.mxu0 0.0
    %393 = vmatpush1.msra.mxu0 %v330
    %394 = vmatprep.subr.mxu0 0.0
    %395 = vmatpush2.msra.mxu0 0.0
    %396 = vmatprep.subr.mxu0 0.0
    %397 = vmatpush2.msra.mxu0 0.0
    %398 = vmatprep.subr.mxu0 0.0
    %399 = vmatpush2.msra.mxu0 0.0
    %400 = vmatprep.subr.mxu0 0.0
    %401 = vmatpush2.msra.mxu0 0.0
    %402 = vmatprep.subr.mxu0 0.0
    %403 = vmatpush2.msra.mxu0 0.0
    %404 = vmatprep.subr.mxu0 0.0
    %405 = vmatpush2.msra.mxu0 0.0
    %406 = vmatprep.subr.mxu0 0.0
    %407 = vmatpush2.msra.mxu0 0.0
    %408 = vmatprep.subr.mxu0 0.0
    %409 = vmatpush2.msra.mxu0 0.0
    %410 = vmatprep.subr.mxu0 0.0
    %411 = vmatpush2.msra.mxu0 0.0
    %412 = vmatprep.subr.mxu0 0.0
    %413 = vmatpush2.msra.mxu0 0.0
    %414 = vmatprep.subr.mxu0 0.0
    %415 = vmatpush2.msra.mxu0 0.0
    %416 = vmatprep.subr.mxu0 0.0
    %417 = vmatpush2.msra.mxu0 0.0
    %418 = vmatprep.subr.mxu0 0.0
    %419 = vmatpush2.msra.mxu0 0.0
    %420 = vmatprep.subr.mxu0 0.0
    %421 = vmatpush2.msra.mxu0 0.0
    %422 = vmatprep.subr.mxu0 0.0
    %423 = vmatpush2.msra.mxu0 0.0
    %424 = vmatprep.subr.mxu0 0.0
    %425 = vmatpush2.msra.mxu0 0.0
    %426 = vmatprep.mubr.f32.mxu0 0.0
    %427 = vmatmul.mubr.f32.gmra.mxu0 %v356
    %v428 = vpop.f32.mrf.mxu0
    %v429 = vadd.f32 0.0, %v428
    %v430 = vpop.f32.mrf.mxu0
    %431 = vdwg.mxu0
    %vm432 = vcmask 130048
    %v434 = vsel %vm432, %v429, 0
    %436 = vmatprep.subr.mxu0 0.0
    %437 = vmatpush1.msra.mxu0 0.0
    %438 = vmatprep.subr.mxu0 0.0
    %439 = vmatpush1.msra.mxu0 0.0
    %440 = vmatprep.subr.mxu0 0.0
    %441 = vmatpush1.msra.mxu0 0.0
    %442 = vmatprep.subr.mxu0 0.0
    %443 = vmatpush1.msra.mxu0 0.0
    %444 = vmatprep.subr.mxu0 0.0
    %445 = vmatpush1.msra.mxu0 0.0
    %446 = vmatprep.subr.mxu0 0.0
    %447 = vmatpush1.msra.mxu0 0.0
    %448 = vmatprep.subr.mxu0 0.0
    %449 = vmatpush1.msra.mxu0 0.0
    %450 = vmatprep.subr.mxu0 0.0
    %451 = vmatpush1.msra.mxu0 0.0
    %452 = vmatprep.subr.mxu0 0.0
    %453 = vmatpush1.msra.mxu0 0.0
    %454 = vmatprep.subr.mxu0 0.0
    %455 = vmatpush1.msra.mxu0 0.0
    %456 = vmatprep.subr.mxu0 0.0
    %457 = vmatpush1.msra.mxu0 0.0
    %458 = vmatprep.subr.mxu0 0.0
    %459 = vmatpush1.msra.mxu0 0.0
    %460 = vmatprep.subr.mxu0 0.0
    %461 = vmatpush1.msra.mxu0 0.0
    %462 = vmatprep.subr.mxu0 0.0
    %463 = vmatpush1.msra.mxu0 0.0
    %464 = vmatprep.subr.mxu0 0.0
    %465 = vmatpush1.msra.mxu0 %v333
    %466 = vmatprep.subr.mxu0 0.0
    %467 = vmatpush1.msra.mxu0 %v332
    %468 = vmatprep.subr.mxu0 0.0
    %469 = vmatpush2.msra.mxu0 0.0
    %470 = vmatprep.subr.mxu0 0.0
    %471 = vmatpush2.msra.mxu0 0.0
    %472 = vmatprep.subr.mxu0 0.0
    %473 = vmatpush2.msra.mxu0 0.0
    %474 = vmatprep.subr.mxu0 0.0
    %475 = vmatpush2.msra.mxu0 0.0
    %476 = vmatprep.subr.mxu0 0.0
    %477 = vmatpush2.msra.mxu0 0.0
    %478 = vmatprep.subr.mxu0 0.0
    %479 = vmatpush2.msra.mxu0 0.0
    %480 = vmatprep.subr.mxu0 0.0
    %481 = vmatpush2.msra.mxu0 0.0
    %482 = vmatprep.subr.mxu0 0.0
    %483 = vmatpush2.msra.mxu0 0.0
    %484 = vmatprep.subr.mxu0 0.0
    %485 = vmatpush2.msra.mxu0 0.0
    %486 = vmatprep.subr.mxu0 0.0
    %487 = vmatpush2.msra.mxu0 0.0
    %488 = vmatprep.subr.mxu0 0.0
    %489 = vmatpush2.msra.mxu0 0.0
    %490 = vmatprep.subr.mxu0 0.0
    %491 = vmatpush2.msra.mxu0 0.0
    %492 = vmatprep.subr.mxu0 0.0
    %493 = vmatpush2.msra.mxu0 0.0
    %494 = vmatprep.subr.mxu0 0.0
    %495 = vmatpush2.msra.mxu0 0.0
    %496 = vmatprep.subr.mxu0 0.0
    %497 = vmatpush2.msra.mxu0 0.0
    %498 = vmatprep.subr.mxu0 0.0
    %499 = vmatpush2.msra.mxu0 0.0
    %500 = vmatprep.mubr.f32.mxu0 0.0
    %501 = vmatmul.mubr.f32.gmra.mxu0 %v434
    %v502 = vpop.f32.mrf.mxu0
    %v503 = vadd.f32 0.0, %v502
    %v504 = vpop.f32.mrf.mxu0
    %505 = vdwg.mxu0
    %v506 = vadd.f32 %v349, %v503
    %v507 = vadd.s32 %v350, 1
    %vm508 = vcmp.eq.s32.totalorder %v146, %v507
    %v509 = vsel %vm508, 1, 0
    %v510 = vcvt.s32.f32 %v509
    %v512 = vsel %vm354, %v510, 0
    %514 = vmatprep.subr.mxu0 0.0
    %515 = vmatpush1.msra.mxu0 0.0
    %516 = vmatprep.subr.mxu0 0.0
    %517 = vmatpush1.msra.mxu0 0.0
    %518 = vmatprep.subr.mxu0 0.0
    %519 = vmatpush1.msra.mxu0 0.0
    %520 = vmatprep.subr.mxu0 0.0
    %521 = vmatpush1.msra.mxu0 0.0
    %522 = vmatprep.subr.mxu0 0.0
    %523 = vmatpush1.msra.mxu0 0.0
    %524 = vmatprep.subr.mxu0 0.0
    %525 = vmatpush1.msra.mxu0 0.0
    %526 = vmatprep.subr.mxu0 0.0
    %527 = vmatpush1.msra.mxu0 0.0
    %528 = vmatprep.subr.mxu0 0.0
    %529 = vmatpush1.msra.mxu0 0.0
    %530 = vmatprep.subr.mxu0 0.0
    %531 = vmatpush1.msra.mxu0 0.0
    %532 = vmatprep.subr.mxu0 0.0
    %533 = vmatpush1.msra.mxu0 0.0
    %534 = vmatprep.subr.mxu0 0.0
    %535 = vmatpush1.msra.mxu0 0.0
    %536 = vmatprep.subr.mxu0 0.0
    %537 = vmatpush1.msra.mxu0 0.0
    %538 = vmatprep.subr.mxu0 0.0
    %539 = vmatpush1.msra.mxu0 0.0
    %540 = vmatprep.subr.mxu0 0.0
    %541 = vmatpush1.msra.mxu0 0.0
    %542 = vmatprep.subr.mxu0 0.0
    %543 = vmatpush1.msra.mxu0 %v360
    %544 = vmatprep.subr.mxu0 0.0
    %545 = vmatpush1.msra.mxu0 %v330
    %546 = vmatprep.subr.mxu0 0.0
    %547 = vmatpush2.msra.mxu0 0.0
    %548 = vmatprep.subr.mxu0 0.0
    %549 = vmatpush2.msra.mxu0 0.0
    %550 = vmatprep.subr.mxu0 0.0
    %551 = vmatpush2.msra.mxu0 0.0
    %552 = vmatprep.subr.mxu0 0.0
    %553 = vmatpush2.msra.mxu0 0.0
    %554 = vmatprep.subr.mxu0 0.0
    %555 = vmatpush2.msra.mxu0 0.0
    %556 = vmatprep.subr.mxu0 0.0
    %557 = vmatpush2.msra.mxu0 0.0
    %558 = vmatprep.subr.mxu0 0.0
    %559 = vmatpush2.msra.mxu0 0.0
    %560 = vmatprep.subr.mxu0 0.0
    %561 = vmatpush2.msra.mxu0 0.0
    %562 = vmatprep.subr.mxu0 0.0
    %563 = vmatpush2.msra.mxu0 0.0
    %564 = vmatprep.subr.mxu0 0.0
    %565 = vmatpush2.msra.mxu0 0.0
    %566 = vmatprep.subr.mxu0 0.0
    %567 = vmatpush2.msra.mxu0 0.0
    %568 = vmatprep.subr.mxu0 0.0
    %569 = vmatpush2.msra.mxu0 0.0
    %570 = vmatprep.subr.mxu0 0.0
    %571 = vmatpush2.msra.mxu0 0.0
    %572 = vmatprep.subr.mxu0 0.0
    %573 = vmatpush2.msra.mxu0 0.0
    %574 = vmatprep.subr.mxu0 0.0
    %575 = vmatpush2.msra.mxu0 0.0
    %576 = vmatprep.subr.mxu0 0.0
    %577 = vmatpush2.msra.mxu0 0.0
    %578 = vmatprep.mubr.f32.mxu0 0.0
    %579 = vmatmul.mubr.f32.gmra.mxu0 %v512
    %v580 = vpop.f32.mrf.mxu0
    %v581 = vadd.f32 0.0, %v580
    %v582 = vpop.f32.mrf.mxu0
    %583 = vdwg.mxu0
    %v585 = vsel %vm432, %v581, 0
    %587 = vmatprep.subr.mxu0 0.0
    %588 = vmatpush1.msra.mxu0 0.0
    %589 = vmatprep.subr.mxu0 0.0
    %590 = vmatpush1.msra.mxu0 0.0
    %591 = vmatprep.subr.mxu0 0.0
    %592 = vmatpush1.msra.mxu0 0.0
    %593 = vmatprep.subr.mxu0 0.0
    %594 = vmatpush1.msra.mxu0 0.0
    %595 = vmatprep.subr.mxu0 0.0
    %596 = vmatpush1.msra.mxu0 0.0
    %597 = vmatprep.subr.mxu0 0.0
    %598 = vmatpush1.msra.mxu0 0.0
    %599 = vmatprep.subr.mxu0 0.0
    %600 = vmatpush1.msra.mxu0 0.0
    %601 = vmatprep.subr.mxu0 0.0
    %602 = vmatpush1.msra.mxu0 0.0
    %603 = vmatprep.subr.mxu0 0.0
    %604 = vmatpush1.msra.mxu0 0.0
    %605 = vmatprep.subr.mxu0 0.0
    %606 = vmatpush1.msra.mxu0 0.0
    %607 = vmatprep.subr.mxu0 0.0
    %608 = vmatpush1.msra.mxu0 0.0
    %609 = vmatprep.subr.mxu0 0.0
    %610 = vmatpush1.msra.mxu0 0.0
    %611 = vmatprep.subr.mxu0 0.0
    %612 = vmatpush1.msra.mxu0 0.0
    %613 = vmatprep.subr.mxu0 0.0
    %614 = vmatpush1.msra.mxu0 0.0
    %615 = vmatprep.subr.mxu0 0.0
    %616 = vmatpush1.msra.mxu0 %v335
    %617 = vmatprep.subr.mxu0 0.0
    %618 = vmatpush1.msra.mxu0 %v334
    %619 = vmatprep.subr.mxu0 0.0
    %620 = vmatpush2.msra.mxu0 0.0
    %621 = vmatprep.subr.mxu0 0.0
    %622 = vmatpush2.msra.mxu0 0.0
    %623 = vmatprep.subr.mxu0 0.0
    %624 = vmatpush2.msra.mxu0 0.0
    %625 = vmatprep.subr.mxu0 0.0
    %626 = vmatpush2.msra.mxu0 0.0
    %627 = vmatprep.subr.mxu0 0.0
    %628 = vmatpush2.msra.mxu0 0.0
    %629 = vmatprep.subr.mxu0 0.0
    %630 = vmatpush2.msra.mxu0 0.0
    %631 = vmatprep.subr.mxu0 0.0
    %632 = vmatpush2.msra.mxu0 0.0
    %633 = vmatprep.subr.mxu0 0.0
    %634 = vmatpush2.msra.mxu0 0.0
    %635 = vmatprep.subr.mxu0 0.0
    %636 = vmatpush2.msra.mxu0 0.0
    %637 = vmatprep.subr.mxu0 0.0
    %638 = vmatpush2.msra.mxu0 0.0
    %639 = vmatprep.subr.mxu0 0.0
    %640 = vmatpush2.msra.mxu0 0.0
    %641 = vmatprep.subr.mxu0 0.0
    %642 = vmatpush2.msra.mxu0 0.0
    %643 = vmatprep.subr.mxu0 0.0
    %644 = vmatpush2.msra.mxu0 0.0
    %645 = vmatprep.subr.mxu0 0.0
    %646 = vmatpush2.msra.mxu0 0.0
    %647 = vmatprep.subr.mxu0 0.0
    %648 = vmatpush2.msra.mxu0 0.0
    %649 = vmatprep.subr.mxu0 0.0
    %650 = vmatpush2.msra.mxu0 0.0
    %651 = vmatprep.mubr.f32.mxu0 0.0
    %652 = vmatmul.mubr.f32.gmra.mxu0 %v585
    %v653 = vpop.f32.mrf.mxu0
    %v654 = vadd.f32 0.0, %v653
    %v655 = vpop.f32.mrf.mxu0
    %656 = vdwg.mxu0
    %v657 = vadd.f32 %v506, %v654
    %v658 = vadd.s32 %v350, 2
    %vm659 = vcmp.eq.s32.totalorder %v146, %v658
    %v660 = vsel %vm659, 1, 0
    %v661 = vcvt.s32.f32 %v660
    %v663 = vsel %vm354, %v661, 0
    %665 = vmatprep.subr.mxu0 0.0
    %666 = vmatpush1.msra.mxu0 0.0
    %667 = vmatprep.subr.mxu0 0.0
    %668 = vmatpush1.msra.mxu0 0.0
    %669 = vmatprep.subr.mxu0 0.0
    %670 = vmatpush1.msra.mxu0 0.0
    %671 = vmatprep.subr.mxu0 0.0
    %672 = vmatpush1.msra.mxu0 0.0
    %673 = vmatprep.subr.mxu0 0.0
    %674 = vmatpush1.msra.mxu0 0.0
    %675 = vmatprep.subr.mxu0 0.0
    %676 = vmatpush1.msra.mxu0 0.0
    %677 = vmatprep.subr.mxu0 0.0
    %678 = vmatpush1.msra.mxu0 0.0
    %679 = vmatprep.subr.mxu0 0.0
    %680 = vmatpush1.msra.mxu0 0.0
    %681 = vmatprep.subr.mxu0 0.0
    %682 = vmatpush1.msra.mxu0 0.0
    %683 = vmatprep.subr.mxu0 0.0
    %684 = vmatpush1.msra.mxu0 0.0
    %685 = vmatprep.subr.mxu0 0.0
    %686 = vmatpush1.msra.mxu0 0.0
    %687 = vmatprep.subr.mxu0 0.0
    %688 = vmatpush1.msra.mxu0 0.0
    %689 = vmatprep.subr.mxu0 0.0
    %690 = vmatpush1.msra.mxu0 0.0
    %691 = vmatprep.subr.mxu0 0.0
    %692 = vmatpush1.msra.mxu0 0.0
    %693 = vmatprep.subr.mxu0 0.0
    %694 = vmatpush1.msra.mxu0 %v360
    %695 = vmatprep.subr.mxu0 0.0
    %696 = vmatpush1.msra.mxu0 %v330
    %697 = vmatprep.subr.mxu0 0.0
    %698 = vmatpush2.msra.mxu0 0.0
    %699 = vmatprep.subr.mxu0 0.0
    %700 = vmatpush2.msra.mxu0 0.0
    %701 = vmatprep.subr.mxu0 0.0
    %702 = vmatpush2.msra.mxu0 0.0
    %703 = vmatprep.subr.mxu0 0.0
    %704 = vmatpush2.msra.mxu0 0.0
    %705 = vmatprep.subr.mxu0 0.0
    %706 = vmatpush2.msra.mxu0 0.0
    %707 = vmatprep.subr.mxu0 0.0
    %708 = vmatpush2.msra.mxu0 0.0
    %709 = vmatprep.subr.mxu0 0.0
    %710 = vmatpush2.msra.mxu0 0.0
    %711 = vmatprep.subr.mxu0 0.0
    %712 = vmatpush2.msra.mxu0 0.0
    %713 = vmatprep.subr.mxu0 0.0
    %714 = vmatpush2.msra.mxu0 0.0
    %715 = vmatprep.subr.mxu0 0.0
    %716 = vmatpush2.msra.mxu0 0.0
    %717 = vmatprep.subr.mxu0 0.0
    %718 = vmatpush2.msra.mxu0 0.0
    %719 = vmatprep.subr.mxu0 0.0
    %720 = vmatpush2.msra.mxu0 0.0
    %721 = vmatprep.subr.mxu0 0.0
    %722 = vmatpush2.msra.mxu0 0.0
    %723 = vmatprep.subr.mxu0 0.0
    %724 = vmatpush2.msra.mxu0 0.0
    %725 = vmatprep.subr.mxu0 0.0
    %726 = vmatpush2.msra.mxu0 0.0
    %727 = vmatprep.subr.mxu0 0.0
    %728 = vmatpush2.msra.mxu0 0.0
    %729 = vmatprep.mubr.f32.mxu0 0.0
    %730 = vmatmul.mubr.f32.gmra.mxu0 %v663
    %v731 = vpop.f32.mrf.mxu0
    %v732 = vadd.f32 0.0, %v731
    %v733 = vpop.f32.mrf.mxu0
    %734 = vdwg.mxu0
    %v736 = vsel %vm432, %v732, 0
    %738 = vmatprep.subr.mxu0 0.0
    %739 = vmatpush1.msra.mxu0 0.0
    %740 = vmatprep.subr.mxu0 0.0
    %741 = vmatpush1.msra.mxu0 0.0
    %742 = vmatprep.subr.mxu0 0.0
    %743 = vmatpush1.msra.mxu0 0.0
    %744 = vmatprep.subr.mxu0 0.0
    %745 = vmatpush1.msra.mxu0 0.0
    %746 = vmatprep.subr.mxu0 0.0
    %747 = vmatpush1.msra.mxu0 0.0
    %748 = vmatprep.subr.mxu0 0.0
    %749 = vmatpush1.msra.mxu0 0.0
    %750 = vmatprep.subr.mxu0 0.0
    %751 = vmatpush1.msra.mxu0 0.0
    %752 = vmatprep.subr.mxu0 0.0
    %753 = vmatpush1.msra.mxu0 0.0
    %754 = vmatprep.subr.mxu0 0.0
    %755 = vmatpush1.msra.mxu0 0.0
    %756 = vmatprep.subr.mxu0 0.0
    %757 = vmatpush1.msra.mxu0 0.0
    %758 = vmatprep.subr.mxu0 0.0
    %759 = vmatpush1.msra.mxu0 0.0
    %760 = vmatprep.subr.mxu0 0.0
    %761 = vmatpush1.msra.mxu0 0.0
    %762 = vmatprep.subr.mxu0 0.0
    %763 = vmatpush1.msra.mxu0 0.0
    %764 = vmatprep.subr.mxu0 0.0
    %765 = vmatpush1.msra.mxu0 0.0
    %766 = vmatprep.subr.mxu0 0.0
    %767 = vmatpush1.msra.mxu0 %v337
    %768 = vmatprep.subr.mxu0 0.0
    %769 = vmatpush1.msra.mxu0 %v336
    %770 = vmatprep.subr.mxu0 0.0
    %771 = vmatpush2.msra.mxu0 0.0
    %772 = vmatprep.subr.mxu0 0.0
    %773 = vmatpush2.msra.mxu0 0.0
    %774 = vmatprep.subr.mxu0 0.0
    %775 = vmatpush2.msra.mxu0 0.0
    %776 = vmatprep.subr.mxu0 0.0
    %777 = vmatpush2.msra.mxu0 0.0
    %778 = vmatprep.subr.mxu0 0.0
    %779 = vmatpush2.msra.mxu0 0.0
    %780 = vmatprep.subr.mxu0 0.0
    %781 = vmatpush2.msra.mxu0 0.0
    %782 = vmatprep.subr.mxu0 0.0
    %783 = vmatpush2.msra.mxu0 0.0
    %784 = vmatprep.subr.mxu0 0.0
    %785 = vmatpush2.msra.mxu0 0.0
    %786 = vmatprep.subr.mxu0 0.0
    %787 = vmatpush2.msra.mxu0 0.0
    %788 = vmatprep.subr.mxu0 0.0
    %789 = vmatpush2.msra.mxu0 0.0
    %790 = vmatprep.subr.mxu0 0.0
    %791 = vmatpush2.msra.mxu0 0.0
    %792 = vmatprep.subr.mxu0 0.0
    %793 = vmatpush2.msra.mxu0 0.0
    %794 = vmatprep.subr.mxu0 0.0
    %795 = vmatpush2.msra.mxu0 0.0
    %796 = vmatprep.subr.mxu0 0.0
    %797 = vmatpush2.msra.mxu0 0.0
    %798 = vmatprep.subr.mxu0 0.0
    %799 = vmatpush2.msra.mxu0 0.0
    %800 = vmatprep.subr.mxu0 0.0
    %801 = vmatpush2.msra.mxu0 0.0
    %802 = vmatprep.mubr.f32.mxu0 0.0
    %803 = vmatmul.mubr.f32.gmra.mxu0 %v736
    %v804 = vpop.f32.mrf.mxu0
    %v805 = vadd.f32 0.0, %v804
    %v806 = vpop.f32.mrf.mxu0
    %807 = vdwg.mxu0
    %v808 = vadd.f32 %v657, %v805
    %v809 = vadd.s32 %v350, 3
    %vm810 = vcmp.eq.s32.totalorder %v146, %v809
    %v811 = vsel %vm810, 1, 0
    %v812 = vcvt.s32.f32 %v811
    %v814 = vsel %vm354, %v812, 0
    %816 = vmatprep.subr.mxu0 0.0
    %817 = vmatpush1.msra.mxu0 0.0
    %818 = vmatprep.subr.mxu0 0.0
    %819 = vmatpush1.msra.mxu0 0.0
    %820 = vmatprep.subr.mxu0 0.0
    %821 = vmatpush1.msra.mxu0 0.0
    %822 = vmatprep.subr.mxu0 0.0
    %823 = vmatpush1.msra.mxu0 0.0
    %824 = vmatprep.subr.mxu0 0.0
    %825 = vmatpush1.msra.mxu0 0.0
    %826 = vmatprep.subr.mxu0 0.0
    %827 = vmatpush1.msra.mxu0 0.0
    %828 = vmatprep.subr.mxu0 0.0
    %829 = vmatpush1.msra.mxu0 0.0
    %830 = vmatprep.subr.mxu0 0.0
    %831 = vmatpush1.msra.mxu0 0.0
    %832 = vmatprep.subr.mxu0 0.0
    %833 = vmatpush1.msra.mxu0 0.0
    %834 = vmatprep.subr.mxu0 0.0
    %835 = vmatpush1.msra.mxu0 0.0
    %836 = vmatprep.subr.mxu0 0.0
    %837 = vmatpush1.msra.mxu0 0.0
    %838 = vmatprep.subr.mxu0 0.0
    %839 = vmatpush1.msra.mxu0 0.0
    %840 = vmatprep.subr.mxu0 0.0
    %841 = vmatpush1.msra.mxu0 0.0
    %842 = vmatprep.subr.mxu0 0.0
    %843 = vmatpush1.msra.mxu0 0.0
    %844 = vmatprep.subr.mxu0 0.0
    %845 = vmatpush1.msra.mxu0 %v360
    %846 = vmatprep.subr.mxu0 0.0
    %847 = vmatpush1.msra.mxu0 %v330
    %848 = vmatprep.subr.mxu0 0.0
    %849 = vmatpush2.msra.mxu0 0.0
    %850 = vmatprep.subr.mxu0 0.0
    %851 = vmatpush2.msra.mxu0 0.0
    %852 = vmatprep.subr.mxu0 0.0
    %853 = vmatpush2.msra.mxu0 0.0
    %854 = vmatprep.subr.mxu0 0.0
    %855 = vmatpush2.msra.mxu0 0.0
    %856 = vmatprep.subr.mxu0 0.0
    %857 = vmatpush2.msra.mxu0 0.0
    %858 = vmatprep.subr.mxu0 0.0
    %859 = vmatpush2.msra.mxu0 0.0
    %860 = vmatprep.subr.mxu0 0.0
    %861 = vmatpush2.msra.mxu0 0.0
    %862 = vmatprep.subr.mxu0 0.0
    %863 = vmatpush2.msra.mxu0 0.0
    %864 = vmatprep.subr.mxu0 0.0
    %865 = vmatpush2.msra.mxu0 0.0
    %866 = vmatprep.subr.mxu0 0.0
    %867 = vmatpush2.msra.mxu0 0.0
    %868 = vmatprep.subr.mxu0 0.0
    %869 = vmatpush2.msra.mxu0 0.0
    %870 = vmatprep.subr.mxu0 0.0
    %871 = vmatpush2.msra.mxu0 0.0
    %872 = vmatprep.subr.mxu0 0.0
    %873 = vmatpush2.msra.mxu0 0.0
    %874 = vmatprep.subr.mxu0 0.0
    %875 = vmatpush2.msra.mxu0 0.0
    %876 = vmatprep.subr.mxu0 0.0
    %877 = vmatpush2.msra.mxu0 0.0
    %878 = vmatprep.subr.mxu0 0.0
    %879 = vmatpush2.msra.mxu0 0.0
    %880 = vmatprep.mubr.f32.mxu0 0.0
    %881 = vmatmul.mubr.f32.gmra.mxu0 %v814
    %v882 = vpop.f32.mrf.mxu0
    %v883 = vadd.f32 0.0, %v882
    %v884 = vpop.f32.mrf.mxu0
    %885 = vdwg.mxu0
    %v887 = vsel %vm432, %v883, 0
    %889 = vmatprep.subr.mxu0 0.0
    %890 = vmatpush1.msra.mxu0 0.0
    %891 = vmatprep.subr.mxu0 0.0
    %892 = vmatpush1.msra.mxu0 0.0
    %893 = vmatprep.subr.mxu0 0.0
    %894 = vmatpush1.msra.mxu0 0.0
    %895 = vmatprep.subr.mxu0 0.0
    %896 = vmatpush1.msra.mxu0 0.0
    %897 = vmatprep.subr.mxu0 0.0
    %898 = vmatpush1.msra.mxu0 0.0
    %899 = vmatprep.subr.mxu0 0.0
    %900 = vmatpush1.msra.mxu0 0.0
    %901 = vmatprep.subr.mxu0 0.0
    %902 = vmatpush1.msra.mxu0 0.0
    %903 = vmatprep.subr.mxu0 0.0
    %904 = vmatpush1.msra.mxu0 0.0
    %905 = vmatprep.subr.mxu0 0.0
    %906 = vmatpush1.msra.mxu0 0.0
    %907 = vmatprep.subr.mxu0 0.0
    %908 = vmatpush1.msra.mxu0 0.0
    %909 = vmatprep.subr.mxu0 0.0
    %910 = vmatpush1.msra.mxu0 0.0
    %911 = vmatprep.subr.mxu0 0.0
    %912 = vmatpush1.msra.mxu0 0.0
    %913 = vmatprep.subr.mxu0 0.0
    %914 = vmatpush1.msra.mxu0 0.0
    %915 = vmatprep.subr.mxu0 0.0
    %916 = vmatpush1.msra.mxu0 0.0
    %917 = vmatprep.subr.mxu0 0.0
    %918 = vmatpush1.msra.mxu0 %v339
    %919 = vmatprep.subr.mxu0 0.0
    %920 = vmatpush1.msra.mxu0 %v338
    %921 = vmatprep.subr.mxu0 0.0
    %922 = vmatpush2.msra.mxu0 0.0
    %923 = vmatprep.subr.mxu0 0.0
    %924 = vmatpush2.msra.mxu0 0.0
    %925 = vmatprep.subr.mxu0 0.0
    %926 = vmatpush2.msra.mxu0 0.0
    %927 = vmatprep.subr.mxu0 0.0
    %928 = vmatpush2.msra.mxu0 0.0
    %929 = vmatprep.subr.mxu0 0.0
    %930 = vmatpush2.msra.mxu0 0.0
    %931 = vmatprep.subr.mxu0 0.0
    %932 = vmatpush2.msra.mxu0 0.0
    %933 = vmatprep.subr.mxu0 0.0
    %934 = vmatpush2.msra.mxu0 0.0
    %935 = vmatprep.subr.mxu0 0.0
    %936 = vmatpush2.msra.mxu0 0.0
    %937 = vmatprep.subr.mxu0 0.0
    %938 = vmatpush2.msra.mxu0 0.0
    %939 = vmatprep.subr.mxu0 0.0
    %940 = vmatpush2.msra.mxu0 0.0
    %941 = vmatprep.subr.mxu0 0.0
    %942 = vmatpush2.msra.mxu0 0.0
    %943 = vmatprep.subr.mxu0 0.0
    %944 = vmatpush2.msra.mxu0 0.0
    %945 = vmatprep.subr.mxu0 0.0
    %946 = vmatpush2.msra.mxu0 0.0
    %947 = vmatprep.subr.mxu0 0.0
    %948 = vmatpush2.msra.mxu0 0.0
    %949 = vmatprep.subr.mxu0 0.0
    %950 = vmatpush2.msra.mxu0 0.0
    %951 = vmatprep.subr.mxu0 0.0
    %952 = vmatpush2.msra.mxu0 0.0
    %953 = vmatprep.mubr.f32.mxu0 0.0
    %954 = vmatmul.mubr.f32.gmra.mxu0 %v887
    %v955 = vpop.f32.mrf.mxu0
    %v956 = vadd.f32 0.0, %v955
    %v957 = vpop.f32.mrf.mxu0
    %958 = vdwg.mxu0
    %v959 = vadd.f32 %v808, %v956
    %v960 = vadd.s32 %v350, 4
    %vm961 = vcmp.eq.s32.totalorder %v146, %v960
    %v962 = vsel %vm961, 1, 0
    %v963 = vcvt.s32.f32 %v962
    %v965 = vsel %vm354, %v963, 0
    %967 = vmatprep.subr.mxu0 0.0
    %968 = vmatpush1.msra.mxu0 0.0
    %969 = vmatprep.subr.mxu0 0.0
    %970 = vmatpush1.msra.mxu0 0.0
    %971 = vmatprep.subr.mxu0 0.0
    %972 = vmatpush1.msra.mxu0 0.0
    %973 = vmatprep.subr.mxu0 0.0
    %974 = vmatpush1.msra.mxu0 0.0
    %975 = vmatprep.subr.mxu0 0.0
    %976 = vmatpush1.msra.mxu0 0.0
    %977 = vmatprep.subr.mxu0 0.0
    %978 = vmatpush1.msra.mxu0 0.0
    %979 = vmatprep.subr.mxu0 0.0
    %980 = vmatpush1.msra.mxu0 0.0
    %981 = vmatprep.subr.mxu0 0.0
    %982 = vmatpush1.msra.mxu0 0.0
    %983 = vmatprep.subr.mxu0 0.0
    %984 = vmatpush1.msra.mxu0 0.0
    %985 = vmatprep.subr.mxu0 0.0
    %986 = vmatpush1.msra.mxu0 0.0
    %987 = vmatprep.subr.mxu0 0.0
    %988 = vmatpush1.msra.mxu0 0.0
    %989 = vmatprep.subr.mxu0 0.0
    %990 = vmatpush1.msra.mxu0 0.0
    %991 = vmatprep.subr.mxu0 0.0
    %992 = vmatpush1.msra.mxu0 0.0
    %993 = vmatprep.subr.mxu0 0.0
    %994 = vmatpush1.msra.mxu0 0.0
    %995 = vmatprep.subr.mxu0 0.0
    %996 = vmatpush1.msra.mxu0 %v360
    %997 = vmatprep.subr.mxu0 0.0
    %998 = vmatpush1.msra.mxu0 %v330
    %999 = vmatprep.subr.mxu0 0.0
    %1000 = vmatpush2.msra.mxu0 0.0
    %1001 = vmatprep.subr.mxu0 0.0
    %1002 = vmatpush2.msra.mxu0 0.0
    %1003 = vmatprep.subr.mxu0 0.0
    %1004 = vmatpush2.msra.mxu0 0.0
    %1005 = vmatprep.subr.mxu0 0.0
    %1006 = vmatpush2.msra.mxu0 0.0
    %1007 = vmatprep.subr.mxu0 0.0
    %1008 = vmatpush2.msra.mxu0 0.0
    %1009 = vmatprep.subr.mxu0 0.0
    %1010 = vmatpush2.msra.mxu0 0.0
    %1011 = vmatprep.subr.mxu0 0.0
    %1012 = vmatpush2.msra.mxu0 0.0
    %1013 = vmatprep.subr.mxu0 0.0
    %1014 = vmatpush2.msra.mxu0 0.0
    %1015 = vmatprep.subr.mxu0 0.0
    %1016 = vmatpush2.msra.mxu0 0.0
    %1017 = vmatprep.subr.mxu0 0.0
    %1018 = vmatpush2.msra.mxu0 0.0
    %1019 = vmatprep.subr.mxu0 0.0
    %1020 = vmatpush2.msra.mxu0 0.0
    %1021 = vmatprep.subr.mxu0 0.0
    %1022 = vmatpush2.msra.mxu0 0.0
    %1023 = vmatprep.subr.mxu0 0.0
    %1024 = vmatpush2.msra.mxu0 0.0
    %1025 = vmatprep.subr.mxu0 0.0
    %1026 = vmatpush2.msra.mxu0 0.0
    %1027 = vmatprep.subr.mxu0 0.0
    %1028 = vmatpush2.msra.mxu0 0.0
    %1029 = vmatprep.subr.mxu0 0.0
    %1030 = vmatpush2.msra.mxu0 0.0
    %1031 = vmatprep.mubr.f32.mxu0 0.0
    %1032 = vmatmul.mubr.f32.gmra.mxu0 %v965
    %v1033 = vpop.f32.mrf.mxu0
    %v1034 = vadd.f32 0.0, %v1033
    %v1035 = vpop.f32.mrf.mxu0
    %1036 = vdwg.mxu0
    %v1038 = vsel %vm432, %v1034, 0
    %1040 = vmatprep.subr.mxu0 0.0
    %1041 = vmatpush1.msra.mxu0 0.0
    %1042 = vmatprep.subr.mxu0 0.0
    %1043 = vmatpush1.msra.mxu0 0.0
    %1044 = vmatprep.subr.mxu0 0.0
    %1045 = vmatpush1.msra.mxu0 0.0
    %1046 = vmatprep.subr.mxu0 0.0
    %1047 = vmatpush1.msra.mxu0 0.0
    %1048 = vmatprep.subr.mxu0 0.0
    %1049 = vmatpush1.msra.mxu0 0.0
    %1050 = vmatprep.subr.mxu0 0.0
    %1051 = vmatpush1.msra.mxu0 0.0
    %1052 = vmatprep.subr.mxu0 0.0
    %1053 = vmatpush1.msra.mxu0 0.0
    %1054 = vmatprep.subr.mxu0 0.0
    %1055 = vmatpush1.msra.mxu0 0.0
    %1056 = vmatprep.subr.mxu0 0.0
    %1057 = vmatpush1.msra.mxu0 0.0
    %1058 = vmatprep.subr.mxu0 0.0
    %1059 = vmatpush1.msra.mxu0 0.0
    %1060 = vmatprep.subr.mxu0 0.0
    %1061 = vmatpush1.msra.mxu0 0.0
    %1062 = vmatprep.subr.mxu0 0.0
    %1063 = vmatpush1.msra.mxu0 0.0
    %1064 = vmatprep.subr.mxu0 0.0
    %1065 = vmatpush1.msra.mxu0 0.0
    %1066 = vmatprep.subr.mxu0 0.0
    %1067 = vmatpush1.msra.mxu0 0.0
    %1068 = vmatprep.subr.mxu0 0.0
    %1069 = vmatpush1.msra.mxu0 %v341
    %1070 = vmatprep.subr.mxu0 0.0
    %1071 = vmatpush1.msra.mxu0 %v340
    %1072 = vmatprep.subr.mxu0 0.0
    %1073 = vmatpush2.msra.mxu0 0.0
    %1074 = vmatprep.subr.mxu0 0.0
    %1075 = vmatpush2.msra.mxu0 0.0
    %1076 = vmatprep.subr.mxu0 0.0
    %1077 = vmatpush2.msra.mxu0 0.0
    %1078 = vmatprep.subr.mxu0 0.0
    %1079 = vmatpush2.msra.mxu0 0.0
    %1080 = vmatprep.subr.mxu0 0.0
    %1081 = vmatpush2.msra.mxu0 0.0
    %1082 = vmatprep.subr.mxu0 0.0
    %1083 = vmatpush2.msra.mxu0 0.0
    %1084 = vmatprep.subr.mxu0 0.0
    %1085 = vmatpush2.msra.mxu0 0.0
    %1086 = vmatprep.subr.mxu0 0.0
    %1087 = vmatpush2.msra.mxu0 0.0
    %1088 = vmatprep.subr.mxu0 0.0
    %1089 = vmatpush2.msra.mxu0 0.0
    %1090 = vmatprep.subr.mxu0 0.0
    %1091 = vmatpush2.msra.mxu0 0.0
    %1092 = vmatprep.subr.mxu0 0.0
    %1093 = vmatpush2.msra.mxu0 0.0
    %1094 = vmatprep.subr.mxu0 0.0
    %1095 = vmatpush2.msra.mxu0 0.0
    %1096 = vmatprep.subr.mxu0 0.0
    %1097 = vmatpush2.msra.mxu0 0.0
    %1098 = vmatprep.subr.mxu0 0.0
    %1099 = vmatpush2.msra.mxu0 0.0
    %1100 = vmatprep.subr.mxu0 0.0
    %1101 = vmatpush2.msra.mxu0 0.0
    %1102 = vmatprep.subr.mxu0 0.0
    %1103 = vmatpush2.msra.mxu0 0.0
    %1104 = vmatprep.mubr.f32.mxu0 0.0
    %1105 = vmatmul.mubr.f32.gmra.mxu0 %v1038
    %v1106 = vpop.f32.mrf.mxu0
    %v1107 = vadd.f32 0.0, %v1106
    %v1108 = vpop.f32.mrf.mxu0
    %1109 = vdwg.mxu0
    %v1110 = vadd.f32 %v959, %v1107
    %v1111 = vmax.f32 %v1110, 0.0
    %v1112 = vld [vmem:[%s5] sm:$0xff]
    %v1113 = vld [vmem:[%s5 + $0x8] sm:$0xff]
    %v1114 = vld [vmem:[%s5 + $0x10] sm:$0xff]
    %v1115 = vld [vmem:[%s5 + $0x18] sm:$0xff]
    %v1116 = vld [vmem:[%s6] sm:$0x1]
    %v1118 = vlaneseq
    %v1119 = vshrl.u32 %v1118, 7
    %v1120 = vsub.s32 0, %v1119
    %v1121 = vrot.slane %v1116, %v1120
    %vm1123 = vcmask 261120
    %v1125 = vsel %vm1123, %v1111, 0
    %1127 = vmatprep.subr.mxu0 0.0
    %1128 = vmatpush1.msra.mxu0 0.0
    %1129 = vmatprep.subr.mxu0 0.0
    %1130 = vmatpush1.msra.mxu0 0.0
    %1131 = vmatprep.subr.mxu0 0.0
    %1132 = vmatpush1.msra.mxu0 0.0
    %1133 = vmatprep.subr.mxu0 0.0
    %1134 = vmatpush1.msra.mxu0 0.0
    %1135 = vmatprep.subr.mxu0 0.0
    %1136 = vmatpush1.msra.mxu0 0.0
    %1137 = vmatprep.subr.mxu0 0.0
    %1138 = vmatpush1.msra.mxu0 0.0
    %1139 = vmatprep.subr.mxu0 0.0
    %1140 = vmatpush1.msra.mxu0 0.0
    %1141 = vmatprep.subr.mxu0 0.0
    %1142 = vmatpush1.msra.mxu0 0.0
    %1143 = vmatprep.subr.mxu0 0.0
    %1144 = vmatpush1.msra.mxu0 0.0
    %1145 = vmatprep.subr.mxu0 0.0
    %1146 = vmatpush1.msra.mxu0 0.0
    %1147 = vmatprep.subr.mxu0 0.0
    %1148 = vmatpush1.msra.mxu0 0.0
    %1149 = vmatprep.subr.mxu0 0.0
    %1150 = vmatpush1.msra.mxu0 0.0
    %1151 = vmatprep.subr.mxu0 0.0
    %1152 = vmatpush1.msra.mxu0 %v1115
    %1153 = vmatprep.subr.mxu0 0.0
    %1154 = vmatpush1.msra.mxu0 %v1114
    %1155 = vmatprep.subr.mxu0 0.0
    %1156 = vmatpush1.msra.mxu0 %v1113
    %1157 = vmatprep.subr.mxu0 0.0
    %1158 = vmatpush1.msra.mxu0 %v1112
    %1159 = vmatprep.subr.mxu0 0.0
    %1160 = vmatpush2.msra.mxu0 0.0
    %1161 = vmatprep.subr.mxu0 0.0
    %1162 = vmatpush2.msra.mxu0 0.0
    %1163 = vmatprep.subr.mxu0 0.0
    %1164 = vmatpush2.msra.mxu0 0.0
    %1165 = vmatprep.subr.mxu0 0.0
    %1166 = vmatpush2.msra.mxu0 0.0
    %1167 = vmatprep.subr.mxu0 0.0
    %1168 = vmatpush2.msra.mxu0 0.0
    %1169 = vmatprep.subr.mxu0 0.0
    %1170 = vmatpush2.msra.mxu0 0.0
    %1171 = vmatprep.subr.mxu0 0.0
    %1172 = vmatpush2.msra.mxu0 0.0
    %1173 = vmatprep.subr.mxu0 0.0
    %1174 = vmatpush2.msra.mxu0 0.0
    %1175 = vmatprep.subr.mxu0 0.0
    %1176 = vmatpush2.msra.mxu0 0.0
    %1177 = vmatprep.subr.mxu0 0.0
    %1178 = vmatpush2.msra.mxu0 0.0
    %1179 = vmatprep.subr.mxu0 0.0
    %1180 = vmatpush2.msra.mxu0 0.0
    %1181 = vmatprep.subr.mxu0 0.0
    %1182 = vmatpush2.msra.mxu0 0.0
    %1183 = vmatprep.subr.mxu0 0.0
    %1184 = vmatpush2.msra.mxu0 0.0
    %1185 = vmatprep.subr.mxu0 0.0
    %1186 = vmatpush2.msra.mxu0 0.0
    %1187 = vmatprep.subr.mxu0 0.0
    %1188 = vmatpush2.msra.mxu0 0.0
    %1189 = vmatprep.subr.mxu0 0.0
    %1190 = vmatpush2.msra.mxu0 0.0
    %1191 = vmatprep.mubr.f32.mxu0 0.0
    %1192 = vmatmul.mubr.f32.gmra.mxu0 %v1125
    %v1193 = vpop.f32.mrf.mxu0
    %v1194 = vadd.f32 %v1121, %v1193
    %v1195 = vpop.f32.mrf.mxu0
    %1196 = vdwg.mxu0
    %v1197 = vmax.f32 %v1194, 0.0
    %v1198 = vld [vmem:[%s7] sm:$0xff]
    %v1199 = vld [vmem:[%s7 + $0x8] sm:$0xff]
    %v1200 = vld [vmem:[%s7 + $0x10] sm:$0xff]
    %v1201 = vld [vmem:[%s7 + $0x18] sm:$0xff]
    %v1202 = vld [vmem:[%s7 + $0x20] sm:$0xff]
    %v1203 = vld [vmem:[%s7 + $0x28] sm:$0xff]
    %v1204 = vld [vmem:[%s7 + $0x30] sm:$0xff]
    %v1205 = vld [vmem:[%s7 + $0x38] sm:$0xff]
    %v1206 = vld [vmem:[%s7 + $0x40] sm:$0xff]
    %v1207 = vld [vmem:[%s7 + $0x48] sm:$0xff]
    %v1208 = vld [vmem:[%s7 + $0x50] sm:$0xff]
    %v1209 = vld [vmem:[%s7 + $0x58] sm:$0xff]
    %v1210 = vld [vmem:[%s7 + $0x60] sm:$0xff]
    %v1211 = vld [vmem:[%s7 + $0x68] sm:$0xff]
    %v1212 = vld [vmem:[%s7 + $0x70] sm:$0xff]
    %v1213 = vld [vmem:[%s7 + $0x78] sm:$0xff]
    %v1214 = vld [vmem:[%s8] sm:$0x1]
    %v1216 = vlaneseq
    %v1217 = vshrl.u32 %v1216, 7
    %v1218 = vsub.s32 0, %v1217
    %v1219 = vrot.slane %v1214, %v1218
    %1221 = vmatprep.subr.mxu0 0.0
    %1222 = vmatpush1.msra.mxu0 %v1213
    %1223 = vmatprep.subr.mxu0 0.0
    %1224 = vmatpush1.msra.mxu0 %v1212
    %1225 = vmatprep.subr.mxu0 0.0
    %1226 = vmatpush1.msra.mxu0 %v1211
    %1227 = vmatprep.subr.mxu0 0.0
    %1228 = vmatpush1.msra.mxu0 %v1210
    %1229 = vmatprep.subr.mxu0 0.0
    %1230 = vmatpush1.msra.mxu0 %v1209
    %1231 = vmatprep.subr.mxu0 0.0
    %1232 = vmatpush1.msra.mxu0 %v1208
    %1233 = vmatprep.subr.mxu0 0.0
    %1234 = vmatpush1.msra.mxu0 %v1207
    %1235 = vmatprep.subr.mxu0 0.0
    %1236 = vmatpush1.msra.mxu0 %v1206
    %1237 = vmatprep.subr.mxu0 0.0
    %1238 = vmatpush1.msra.mxu0 %v1205
    %1239 = vmatprep.subr.mxu0 0.0
    %1240 = vmatpush1.msra.mxu0 %v1204
    %1241 = vmatprep.subr.mxu0 0.0
    %1242 = vmatpush1.msra.mxu0 %v1203
    %1243 = vmatprep.subr.mxu0 0.0
    %1244 = vmatpush1.msra.mxu0 %v1202
    %1245 = vmatprep.subr.mxu0 0.0
    %1246 = vmatpush1.msra.mxu0 %v1201
    %1247 = vmatprep.subr.mxu0 0.0
    %1248 = vmatpush1.msra.mxu0 %v1200
    %1249 = vmatprep.subr.mxu0 0.0
    %1250 = vmatpush1.msra.mxu0 %v1199
    %1251 = vmatprep.subr.mxu0 0.0
    %1252 = vmatpush1.msra.mxu0 %v1198
    %1253 = vmatprep.subr.mxu0 0.0
    %1254 = vmatpush2.msra.mxu0 0.0
    %1255 = vmatprep.subr.mxu0 0.0
    %1256 = vmatpush2.msra.mxu0 0.0
    %1257 = vmatprep.subr.mxu0 0.0
    %1258 = vmatpush2.msra.mxu0 0.0
    %1259 = vmatprep.subr.mxu0 0.0
    %1260 = vmatpush2.msra.mxu0 0.0
    %1261 = vmatprep.subr.mxu0 0.0
    %1262 = vmatpush2.msra.mxu0 0.0
    %1263 = vmatprep.subr.mxu0 0.0
    %1264 = vmatpush2.msra.mxu0 0.0
    %1265 = vmatprep.subr.mxu0 0.0
    %1266 = vmatpush2.msra.mxu0 0.0
    %1267 = vmatprep.subr.mxu0 0.0
    %1268 = vmatpush2.msra.mxu0 0.0
    %1269 = vmatprep.subr.mxu0 0.0
    %1270 = vmatpush2.msra.mxu0 0.0
    %1271 = vmatprep.subr.mxu0 0.0
    %1272 = vmatpush2.msra.mxu0 0.0
    %1273 = vmatprep.subr.mxu0 0.0
    %1274 = vmatpush2.msra.mxu0 0.0
    %1275 = vmatprep.subr.mxu0 0.0
    %1276 = vmatpush2.msra.mxu0 0.0
    %1277 = vmatprep.subr.mxu0 0.0
    %1278 = vmatpush2.msra.mxu0 0.0
    %1279 = vmatprep.subr.mxu0 0.0
    %1280 = vmatpush2.msra.mxu0 0.0
    %1281 = vmatprep.subr.mxu0 0.0
    %1282 = vmatpush2.msra.mxu0 0.0
    %1283 = vmatprep.subr.mxu0 0.0
    %1284 = vmatpush2.msra.mxu0 0.0
    %1285 = vmatprep.mubr.f32.mxu0 0.0
    %1286 = vmatmul.mubr.f32.gmra.mxu0 %v1197
    %v1287 = vpop.f32.mrf.mxu0
    %v1288 = vadd.f32 %v1219, %v1287
    %v1289 = vpop.f32.mrf.mxu0
    %1290 = vdwg.mxu0
    %vm1291 = vcmask 9216
    %v1292 = vsel %vm1291, %v1288, -inf
    %1293 = vmax.xlane.f32.xlu0 %v1292
    %v1294 = vpop.xlane.xlu0 %1293
    %v1295 = vsub.f32 %v1288, %v1294
    %v1296 = vmul.f32 %v1295, 1.442695
    %v1297 = vpow.pop %v1296
    %v1298 = vsel %vm1291, %v1297, 0.0
    %1299 = vadd.xlane.f32.xlu0 %v1298
    %v1300 = vpop.xlane.xlu0 %1299
    %v1301 = vlog2.pop %v1300
    %v1302 = vmul.f32 %v1301, 0.6931472
    %v1303 = vsub.f32 %v1295, %v1302
    %1304 = vst.msk [vmem:[#allocation2] sm:$0x3] %vm1291, %v1303
    // Predicated region
    $region38: #{dgcnn_forward.3} parent=1 // pred_check
      _
    $region39: #{dgcnn_forward.3} parent=1 // pred_check_branch
      %1306 = sbr.rel (0) target = $region41
    $region40: #{dgcnn_forward.3} parent=1 // pred_region
      %s1308 = ssub.s32 32, 32
      %1309 = vsyncadd [#allocation3], %s1308
      %s1311 = sshll.u32 [#allocation2], 4
      %s1312 = int_to_ptr.vmem [resolvable:$true] %s1311
      %1314 = dma.vmem_to_hbm [thread:$0]  %s1312, 32, %s9, [#allocation3]
    $region41: #{dgcnn_forward.3} parent=1 // pred_fallthru
      _
    // Predicated region
    $region42: #{dgcnn_forward.3} parent=1 // pred_check
      _
    $region43: #{dgcnn_forward.3} parent=1 // pred_check_branch
      %1316 = sbr.rel (0) target = $region45
    $region44: #{dgcnn_forward.3} parent=1 // pred_region
      %1317 = dma.done [#allocation3], 32
    $region45: #{dgcnn_forward.3} parent=1 // pred_fallthru
      _
    %1318 = vsyncpa [#allocation3], 1

</llo_original>
